<compile_context>
chip_gen: v6e
topology: v6e:2x2x1
jax: 0.10.0
libtpu: 0.0.40
codegen_flags: <defaults>
</compile_context>

<pallas_src>
import functools
import math

import jax
import jax.numpy as jnp
from jax import lax
from jax.experimental import pallas as pl
from jax.experimental.pallas import tpu as pltpu


def _mhla_kernel(num_heads, head_dim, batch,
                 lq_ref, enc_ref, wq_ref, wkv_ref, bq_ref, bkv_ref,
                 m_ref, c_ref, lims_ref, o_ref):
    f32 = jnp.float32
    # Contract the LAST dim of both operands == x @ W.T, no transpose needed.
    dn_t = (((1,), (1,)), ((), ()))

    scale = f32(1.0 / math.sqrt(head_dim))
    # ---- batch-invariant work: computed exactly once --------------------
    # Fold the 1/sqrt(dh) attention scale into q.
    q = (lax.dot_general(lq_ref[...], wq_ref[...], dn_t,
                         preferred_element_type=f32) + bq_ref[...]) * scale   # (Nl, H)
    kv = lax.dot_general(enc_ref[...], wkv_ref[...], dn_t,
                         preferred_element_type=f32) + bkv_ref[...]           # (S, 2H)
    H = num_heads * head_dim
    k = kv[:, :H]
    v = kv[:, H:]
    M = m_ref[...]                                                            # (Nl, H)

    Nl = q.shape[0]
    S = k.shape[0]

    s_heads = []   # per-head scaled logits      (Nl, S)
    g_heads = []   # label-folded value grams    (Nl, S):  G_h = M_h @ V_h^T
    for h in range(num_heads):
        lo, hi = h * head_dim, (h + 1) * head_dim
        s_heads.append(lax.dot_general(q[:, lo:hi], k[:, lo:hi], dn_t,
                                       preferred_element_type=f32))
        g_heads.append(lax.dot_general(M[:, lo:hi], v[:, lo:hi], dn_t,
                                       preferred_element_type=f32))

    # Key-padding mask built in-kernel from scalar limits (no bias DMA).
    col = lax.broadcasted_iota(jnp.int32, (Nl, S), 1)

    # ---- per selected cutoff row: softmax + weighted reduce only --------
    rows = []
    for b in range(batch):                                  # tiny static loop
        bias = jnp.where(col >= lims_ref[b], f32(-1e30), f32(0.0))   # (Nl, S)
        acc = jnp.zeros((Nl, S), f32)
        for h in range(num_heads):
            sb = s_heads[h] + bias
            mmax = jnp.max(sb, axis=-1, keepdims=True)
            e = jnp.exp(sb - mmax)
            p = e * pl.reciprocal(jnp.sum(e, axis=-1, keepdims=True),
                                  approx=True)
            acc = acc + p * g_heads[h]
        rows.append(jnp.sum(acc, axis=-1).reshape(1, Nl))
    # score[b, l] = sum_s acc_b[l, s] + (wview @ out_proj_bias)[l]
    o_ref[...] = jnp.concatenate(rows, axis=0) + c_ref[...]


def temporal_mhla_forward(encoding, cutoff_indices, params, num_heads, seq_len):
    """encoding: (Nc*T, H) f32; cutoff_indices: (B,) int32 selected mask rows."""
    lq = params["label_queries"]                      # (Nl, H)
    Nl, H = lq.shape
    B = int(cutoff_indices.shape[0])
    head_dim = H // num_heads

    w_in = params["in_proj_weight"]                   # (3H, H) = [Wq; Wk; Wv]
    b_in = params["in_proj_bias"]                     # (3H,)
    wq = w_in[:H]                                     # (H, H)
    wkv = w_in[H:]                                    # (2H, H) fused K/V proj
    bq = b_in[:H].reshape(1, H)
    bkv = b_in[H:].reshape(1, 2 * H)

    # Reproduce torch's label_weights.unsqueeze(0).view(1, Nl, H): a row-major
    # RESHAPE of the (H, Nl) parameter, not a transpose.
    wview = params["label_weights"].reshape(Nl, H)
    # Fold output projection + label-weight reduction:
    #   sum((A @ Wo^T + bo) * wview, -1) == rowsum(A ⊙ (wview @ Wo)) + wview @ bo
    m_fold = wview @ params["out_proj_weight"]        # (Nl, H)
    c_fold = (wview @ params["out_proj_bias"]).reshape(1, Nl)

    # torch mask: mask[i, j] = (j >= (i+1)*T) -> only the scalar limit is needed.
    lims = ((cutoff_indices.astype(jnp.int32) + 1) * seq_len).astype(jnp.int32)

    kernel = functools.partial(_mhla_kernel, num_heads, head_dim, B)
    vmem = functools.partial(pl.BlockSpec, memory_space=pltpu.MemorySpace.VMEM)
    smem = functools.partial(pl.BlockSpec, memory_space=pltpu.MemorySpace.SMEM)

    out = pl.pallas_call(
        kernel,
        out_shape=jax.ShapeDtypeStruct((B, Nl), jnp.float32),
        in_specs=[vmem(), vmem(), vmem(), vmem(), vmem(), vmem(),
                  vmem(), vmem(), smem()],
        out_specs=vmem(),
    )(lq, encoding, wq, wkv, bq, bkv, m_fold, c_fold, lims)
    return out


def reference_forward(encoding, mask, params, num_heads):
    """Pure-JAX reference mirroring nn.MultiheadAttention + score reduction."""
    lq = params["label_queries"]
    Nl, H = lq.shape
    dh = H // num_heads
    B = mask.shape[0]
    wq, wk, wv = jnp.split(params["in_proj_weight"], 3, axis=0)
    bq, bk, bv = jnp.split(params["in_proj_bias"], 3)
    q = lq @ wq.T + bq
    k = encoding @ wk.T + bk
    v = encoding @ wv.T + bv
    qh = q.reshape(Nl, num_heads, dh).transpose(1, 0, 2)       # (h, Nl, dh)
    kh = k.reshape(-1, num_heads, dh).transpose(1, 0, 2)       # (h, S, dh)
    vh = v.reshape(-1, num_heads, dh).transpose(1, 0, 2)
    s = jnp.einsum("hld,hsd->hls", qh, kh) / math.sqrt(dh)     # (h, Nl, S)
    s = s[None] + jnp.where(mask, -1e30, 0.0)[:, None, None, :]
    p = jax.nn.softmax(s, axis=-1)
    a = jnp.einsum("bhls,hsd->bhld", p, vh)
    a = a.transpose(0, 2, 1, 3).reshape(B, Nl, H)
    out = a @ params["out_proj_weight"].T + params["out_proj_bias"]
    wview = params["label_weights"].reshape(Nl, H)
    return jnp.sum(out * wview[None], axis=-1)


if __name__ == "__main__":
    # Module hyper-parameters (small, consistent with the forward pass).
    hidden_size = 32      # H
    seq_len = 8           # T
    num_labels = 16       # Nl
    num_heads = 4
    Nc = 4                # number of "chunks"; encoding has Nc*T tokens
    S = Nc * seq_len      # 32 tokens

    key = jax.random.PRNGKey(0)
    keys = jax.random.split(key, 8)

    params = {
        "label_queries":   0.1 * jax.random.normal(keys[0], (num_labels, hidden_size), jnp.float32),
        "label_weights":   0.1 * jax.random.normal(keys[1], (hidden_size, num_labels), jnp.float32),
        "in_proj_weight":  0.1 * jax.random.normal(keys[2], (3 * hidden_size, hidden_size), jnp.float32),
        "in_proj_bias":    0.1 * jax.random.normal(keys[3], (3 * hidden_size,), jnp.float32),
        "out_proj_weight": 0.1 * jax.random.normal(keys[4], (hidden_size, hidden_size), jnp.float32),
        "out_proj_bias":   0.1 * jax.random.normal(keys[5], (hidden_size,), jnp.float32),
    }

    # encoding: (Nc*T, H), same role as the torch `encoding` argument.
    encoding = jax.random.normal(keys[6], (S, hidden_size), jnp.float32)

    # reduce_computation=True: rows selected by cutoff indices (deterministic).
    cutoff_indices = jnp.array([1, 3], dtype=jnp.int32)         # B = 2

    # Reference mask: torch loop mask[i, :(i+1)*T] = False -> mask = (j >= (i+1)*T)
    col = jnp.arange(S)[None, :]
    mask = col >= ((cutoff_indices[:, None] + 1) * seq_len)     # (B, S) bool

    score = temporal_mhla_forward(encoding, cutoff_indices, params, num_heads, seq_len)
    score = jax.block_until_ready(score)

    ref = reference_forward(encoding, mask, params, num_heads)
    assert score.shape == (cutoff_indices.shape[0], num_labels)
    # Tolerance relaxed slightly versus exact-divide softmax because the kernel
    # uses the EUP approximate reciprocal (pl.reciprocal(approx=True)).
    assert jnp.allclose(score, ref, rtol=5e-3, atol=1e-3), (score, ref)

    print("KERNEL_OK")
</pallas_src>

<mosaic_0001>
module attributes {stable_mosaic.version = 11 : i64} {
  func.func @_mhla_kernel(%arg0: memref<16x32xf32, #tpu.memory_space<vmem>>, %arg1: memref<32x32xf32, #tpu.memory_space<vmem>>, %arg2: memref<32x32xf32, #tpu.memory_space<vmem>>, %arg3: memref<64x32xf32, #tpu.memory_space<vmem>>, %arg4: memref<1x32xf32, #tpu.memory_space<vmem>>, %arg5: memref<1x64xf32, #tpu.memory_space<vmem>>, %arg6: memref<16x32xf32, #tpu.memory_space<vmem>>, %arg7: memref<1x16xf32, #tpu.memory_space<vmem>>, %arg8: memref<2xi32, #tpu.memory_space<smem>>, %arg9: memref<2x16xf32, #tpu.memory_space<vmem>>) attributes {dimension_semantics = [], scalar_prefetch = 0 : i64, scratch_operands = 0 : i64, tpu.core_type = #tpu.core_type<tc>} {
    %c0 = arith.constant 0 : index
    %c0_0 = arith.constant 0 : index
    %0 = vector.load %arg0[%c0, %c0_0] : memref<16x32xf32, #tpu.memory_space<vmem>>, vector<16x32xf32>
    %c0_1 = arith.constant 0 : index
    %c0_2 = arith.constant 0 : index
    %1 = vector.load %arg2[%c0_1, %c0_2] : memref<32x32xf32, #tpu.memory_space<vmem>>, vector<32x32xf32>
    %cst = arith.constant dense<0.000000e+00> : vector<16x32xf32>
    %2 = tpu.matmul %0, %1, %cst {dimension_numbers = #tpu.dot_dimension_numbers<[1], [1], [0], [0], [0, 0, 1, 0], [], []>} : vector<16x32xf32>, vector<32x32xf32>, vector<16x32xf32> -> vector<16x32xf32>
    %c0_3 = arith.constant 0 : index
    %c0_4 = arith.constant 0 : index
    %3 = vector.load %arg4[%c0_3, %c0_4] : memref<1x32xf32, #tpu.memory_space<vmem>>, vector<1x32xf32>
    %4 = vector.broadcast %3 : vector<1x32xf32> to vector<16x32xf32>
    %5 = arith.addf %2, %4 : vector<16x32xf32>
    %cst_5 = arith.constant 0.353553385 : f32
    %6 = vector.broadcast %cst_5 : f32 to vector<16x32xf32>
    %7 = arith.mulf %5, %6 : vector<16x32xf32>
    %c0_6 = arith.constant 0 : index
    %c0_7 = arith.constant 0 : index
    %8 = vector.load %arg1[%c0_6, %c0_7] : memref<32x32xf32, #tpu.memory_space<vmem>>, vector<32x32xf32>
    %c0_8 = arith.constant 0 : index
    %c0_9 = arith.constant 0 : index
    %9 = vector.load %arg3[%c0_8, %c0_9] : memref<64x32xf32, #tpu.memory_space<vmem>>, vector<64x32xf32>
    %cst_10 = arith.constant dense<0.000000e+00> : vector<32x64xf32>
    %10 = tpu.matmul %8, %9, %cst_10 {dimension_numbers = #tpu.dot_dimension_numbers<[1], [1], [0], [0], [0, 0, 1, 0], [], []>} : vector<32x32xf32>, vector<64x32xf32>, vector<32x64xf32> -> vector<32x64xf32>
    %c0_11 = arith.constant 0 : index
    %c0_12 = arith.constant 0 : index
    %11 = vector.load %arg5[%c0_11, %c0_12] : memref<1x64xf32, #tpu.memory_space<vmem>>, vector<1x64xf32>
    %12 = vector.broadcast %11 : vector<1x64xf32> to vector<32x64xf32>
    %13 = arith.addf %10, %12 : vector<32x64xf32>
    %14 = vector.extract_strided_slice %13 {offsets = [0, 0], sizes = [32, 32], strides = [1, 1]} : vector<32x64xf32> to vector<32x32xf32>
    %15 = vector.extract_strided_slice %13 {offsets = [0, 32], sizes = [32, 32], strides = [1, 1]} : vector<32x64xf32> to vector<32x32xf32>
    %c0_13 = arith.constant 0 : index
    %c0_14 = arith.constant 0 : index
    %16 = vector.load %arg6[%c0_13, %c0_14] : memref<16x32xf32, #tpu.memory_space<vmem>>, vector<16x32xf32>
    %17 = vector.extract_strided_slice %7 {offsets = [0, 0], sizes = [16, 8], strides = [1, 1]} : vector<16x32xf32> to vector<16x8xf32>
    %18 = vector.extract_strided_slice %14 {offsets = [0, 0], sizes = [32, 8], strides = [1, 1]} : vector<32x32xf32> to vector<32x8xf32>
    %cst_15 = arith.constant dense<0.000000e+00> : vector<16x32xf32>
    %19 = tpu.matmul %17, %18, %cst_15 {dimension_numbers = #tpu.dot_dimension_numbers<[1], [1], [0], [0], [0, 0, 1, 0], [], []>} : vector<16x8xf32>, vector<32x8xf32>, vector<16x32xf32> -> vector<16x32xf32>
    %20 = vector.extract_strided_slice %16 {offsets = [0, 0], sizes = [16, 8], strides = [1, 1]} : vector<16x32xf32> to vector<16x8xf32>
    %21 = vector.extract_strided_slice %15 {offsets = [0, 0], sizes = [32, 8], strides = [1, 1]} : vector<32x32xf32> to vector<32x8xf32>
    %cst_16 = arith.constant dense<0.000000e+00> : vector<16x32xf32>
    %22 = tpu.matmul %20, %21, %cst_16 {dimension_numbers = #tpu.dot_dimension_numbers<[1], [1], [0], [0], [0, 0, 1, 0], [], []>} : vector<16x8xf32>, vector<32x8xf32>, vector<16x32xf32> -> vector<16x32xf32>
    %23 = vector.extract_strided_slice %7 {offsets = [0, 8], sizes = [16, 8], strides = [1, 1]} : vector<16x32xf32> to vector<16x8xf32>
    %24 = vector.extract_strided_slice %14 {offsets = [0, 8], sizes = [32, 8], strides = [1, 1]} : vector<32x32xf32> to vector<32x8xf32>
    %cst_17 = arith.constant dense<0.000000e+00> : vector<16x32xf32>
    %25 = tpu.matmul %23, %24, %cst_17 {dimension_numbers = #tpu.dot_dimension_numbers<[1], [1], [0], [0], [0, 0, 1, 0], [], []>} : vector<16x8xf32>, vector<32x8xf32>, vector<16x32xf32> -> vector<16x32xf32>
    %26 = vector.extract_strided_slice %16 {offsets = [0, 8], sizes = [16, 8], strides = [1, 1]} : vector<16x32xf32> to vector<16x8xf32>
    %27 = vector.extract_strided_slice %15 {offsets = [0, 8], sizes = [32, 8], strides = [1, 1]} : vector<32x32xf32> to vector<32x8xf32>
    %cst_18 = arith.constant dense<0.000000e+00> : vector<16x32xf32>
    %28 = tpu.matmul %26, %27, %cst_18 {dimension_numbers = #tpu.dot_dimension_numbers<[1], [1], [0], [0], [0, 0, 1, 0], [], []>} : vector<16x8xf32>, vector<32x8xf32>, vector<16x32xf32> -> vector<16x32xf32>
    %29 = vector.extract_strided_slice %7 {offsets = [0, 16], sizes = [16, 8], strides = [1, 1]} : vector<16x32xf32> to vector<16x8xf32>
    %30 = vector.extract_strided_slice %14 {offsets = [0, 16], sizes = [32, 8], strides = [1, 1]} : vector<32x32xf32> to vector<32x8xf32>
    %cst_19 = arith.constant dense<0.000000e+00> : vector<16x32xf32>
    %31 = tpu.matmul %29, %30, %cst_19 {dimension_numbers = #tpu.dot_dimension_numbers<[1], [1], [0], [0], [0, 0, 1, 0], [], []>} : vector<16x8xf32>, vector<32x8xf32>, vector<16x32xf32> -> vector<16x32xf32>
    %32 = vector.extract_strided_slice %16 {offsets = [0, 16], sizes = [16, 8], strides = [1, 1]} : vector<16x32xf32> to vector<16x8xf32>
    %33 = vector.extract_strided_slice %15 {offsets = [0, 16], sizes = [32, 8], strides = [1, 1]} : vector<32x32xf32> to vector<32x8xf32>
    %cst_20 = arith.constant dense<0.000000e+00> : vector<16x32xf32>
    %34 = tpu.matmul %32, %33, %cst_20 {dimension_numbers = #tpu.dot_dimension_numbers<[1], [1], [0], [0], [0, 0, 1, 0], [], []>} : vector<16x8xf32>, vector<32x8xf32>, vector<16x32xf32> -> vector<16x32xf32>
    %35 = vector.extract_strided_slice %7 {offsets = [0, 24], sizes = [16, 8], strides = [1, 1]} : vector<16x32xf32> to vector<16x8xf32>
    %36 = vector.extract_strided_slice %14 {offsets = [0, 24], sizes = [32, 8], strides = [1, 1]} : vector<32x32xf32> to vector<32x8xf32>
    %cst_21 = arith.constant dense<0.000000e+00> : vector<16x32xf32>
    %37 = tpu.matmul %35, %36, %cst_21 {dimension_numbers = #tpu.dot_dimension_numbers<[1], [1], [0], [0], [0, 0, 1, 0], [], []>} : vector<16x8xf32>, vector<32x8xf32>, vector<16x32xf32> -> vector<16x32xf32>
    %38 = vector.extract_strided_slice %16 {offsets = [0, 24], sizes = [16, 8], strides = [1, 1]} : vector<16x32xf32> to vector<16x8xf32>
    %39 = vector.extract_strided_slice %15 {offsets = [0, 24], sizes = [32, 8], strides = [1, 1]} : vector<32x32xf32> to vector<32x8xf32>
    %cst_22 = arith.constant dense<0.000000e+00> : vector<16x32xf32>
    %40 = tpu.matmul %38, %39, %cst_22 {dimension_numbers = #tpu.dot_dimension_numbers<[1], [1], [0], [0], [0, 0, 1, 0], [], []>} : vector<16x8xf32>, vector<32x8xf32>, vector<16x32xf32> -> vector<16x32xf32>
    %41 = tpu.iota {dimensions = array<i32: 1>} : vector<16x32xi32>
    %c0_23 = arith.constant 0 : index
    %42 = memref.load %arg8[%c0_23] : memref<2xi32, #tpu.memory_space<smem>>
    %43 = vector.broadcast %42 : i32 to vector<16x32xi32>
    %44 = arith.cmpi sge, %41, %43 : vector<16x32xi32>
    %cst_24 = arith.constant -1.000000e+30 : f32
    %cst_25 = arith.constant 0.000000e+00 : f32
    %45 = vector.broadcast %cst_24 : f32 to vector<16x32xf32>
    %46 = vector.broadcast %cst_25 : f32 to vector<16x32xf32>
    %47 = arith.select %44, %45, %46 : vector<16x32xi1>, vector<16x32xf32>
    %cst_26 = arith.constant 0.000000e+00 : f32
    %48 = vector.broadcast %cst_26 : f32 to vector<16x32xf32>
    %49 = arith.addf %19, %47 : vector<16x32xf32>
    %cst_27 = arith.constant dense<0xFF800000> : vector<16xf32>
    %50 = vector.multi_reduction <maximumf>, %49, %cst_27 [1] : vector<16x32xf32> to vector<16xf32>
    %51 = vector.shape_cast %50 : vector<16xf32> to vector<16x1xf32>
    %52 = vector.broadcast %51 : vector<16x1xf32> to vector<16x32xf32>
    %53 = arith.subf %49, %52 : vector<16x32xf32>
    %54 = math.exp %53 : vector<16x32xf32>
    %cst_28 = arith.constant dense<0.000000e+00> : vector<16xf32>
    %55 = vector.multi_reduction <add>, %54, %cst_28 [1] : vector<16x32xf32> to vector<16xf32>
    %56 = vector.shape_cast %55 : vector<16xf32> to vector<16x1xf32>
    %57 = tpu.reciprocal %56 {approx = true} : vector<16x1xf32> -> vector<16x1xf32>
    %58 = vector.broadcast %57 : vector<16x1xf32> to vector<16x32xf32>
    %59 = arith.mulf %54, %58 : vector<16x32xf32>
    %60 = arith.mulf %59, %22 : vector<16x32xf32>
    %61 = arith.addf %48, %60 : vector<16x32xf32>
    %62 = arith.addf %25, %47 : vector<16x32xf32>
    %cst_29 = arith.constant dense<0xFF800000> : vector<16xf32>
    %63 = vector.multi_reduction <maximumf>, %62, %cst_29 [1] : vector<16x32xf32> to vector<16xf32>
    %64 = vector.shape_cast %63 : vector<16xf32> to vector<16x1xf32>
    %65 = vector.broadcast %64 : vector<16x1xf32> to vector<16x32xf32>
    %66 = arith.subf %62, %65 : vector<16x32xf32>
    %67 = math.exp %66 : vector<16x32xf32>
    %cst_30 = arith.constant dense<0.000000e+00> : vector<16xf32>
    %68 = vector.multi_reduction <add>, %67, %cst_30 [1] : vector<16x32xf32> to vector<16xf32>
    %69 = vector.shape_cast %68 : vector<16xf32> to vector<16x1xf32>
    %70 = tpu.reciprocal %69 {approx = true} : vector<16x1xf32> -> vector<16x1xf32>
    %71 = vector.broadcast %70 : vector<16x1xf32> to vector<16x32xf32>
    %72 = arith.mulf %67, %71 : vector<16x32xf32>
    %73 = arith.mulf %72, %28 : vector<16x32xf32>
    %74 = arith.addf %61, %73 : vector<16x32xf32>
    %75 = arith.addf %31, %47 : vector<16x32xf32>
    %cst_31 = arith.constant dense<0xFF800000> : vector<16xf32>
    %76 = vector.multi_reduction <maximumf>, %75, %cst_31 [1] : vector<16x32xf32> to vector<16xf32>
    %77 = vector.shape_cast %76 : vector<16xf32> to vector<16x1xf32>
    %78 = vector.broadcast %77 : vector<16x1xf32> to vector<16x32xf32>
    %79 = arith.subf %75, %78 : vector<16x32xf32>
    %80 = math.exp %79 : vector<16x32xf32>
    %cst_32 = arith.constant dense<0.000000e+00> : vector<16xf32>
    %81 = vector.multi_reduction <add>, %80, %cst_32 [1] : vector<16x32xf32> to vector<16xf32>
    %82 = vector.shape_cast %81 : vector<16xf32> to vector<16x1xf32>
    %83 = tpu.reciprocal %82 {approx = true} : vector<16x1xf32> -> vector<16x1xf32>
    %84 = vector.broadcast %83 : vector<16x1xf32> to vector<16x32xf32>
    %85 = arith.mulf %80, %84 : vector<16x32xf32>
    %86 = arith.mulf %85, %34 : vector<16x32xf32>
    %87 = arith.addf %74, %86 : vector<16x32xf32>
    %88 = arith.addf %37, %47 : vector<16x32xf32>
    %cst_33 = arith.constant dense<0xFF800000> : vector<16xf32>
    %89 = vector.multi_reduction <maximumf>, %88, %cst_33 [1] : vector<16x32xf32> to vector<16xf32>
    %90 = vector.shape_cast %89 : vector<16xf32> to vector<16x1xf32>
    %91 = vector.broadcast %90 : vector<16x1xf32> to vector<16x32xf32>
    %92 = arith.subf %88, %91 : vector<16x32xf32>
    %93 = math.exp %92 : vector<16x32xf32>
    %cst_34 = arith.constant dense<0.000000e+00> : vector<16xf32>
    %94 = vector.multi_reduction <add>, %93, %cst_34 [1] : vector<16x32xf32> to vector<16xf32>
    %95 = vector.shape_cast %94 : vector<16xf32> to vector<16x1xf32>
    %96 = tpu.reciprocal %95 {approx = true} : vector<16x1xf32> -> vector<16x1xf32>
    %97 = vector.broadcast %96 : vector<16x1xf32> to vector<16x32xf32>
    %98 = arith.mulf %93, %97 : vector<16x32xf32>
    %99 = arith.mulf %98, %40 : vector<16x32xf32>
    %100 = arith.addf %87, %99 : vector<16x32xf32>
    %cst_35 = arith.constant dense<0.000000e+00> : vector<16xf32>
    %101 = vector.multi_reduction <add>, %100, %cst_35 [1] : vector<16x32xf32> to vector<16xf32>
    %102 = vector.shape_cast %101 : vector<16xf32> to vector<1x16xf32>
    %c1 = arith.constant 1 : index
    %103 = memref.load %arg8[%c1] : memref<2xi32, #tpu.memory_space<smem>>
    %104 = vector.broadcast %103 : i32 to vector<16x32xi32>
    %105 = arith.cmpi sge, %41, %104 : vector<16x32xi32>
    %cst_36 = arith.constant -1.000000e+30 : f32
    %cst_37 = arith.constant 0.000000e+00 : f32
    %106 = vector.broadcast %cst_36 : f32 to vector<16x32xf32>
    %107 = vector.broadcast %cst_37 : f32 to vector<16x32xf32>
    %108 = arith.select %105, %106, %107 : vector<16x32xi1>, vector<16x32xf32>
    %cst_38 = arith.constant 0.000000e+00 : f32
    %109 = vector.broadcast %cst_38 : f32 to vector<16x32xf32>
    %110 = arith.addf %19, %108 : vector<16x32xf32>
    %cst_39 = arith.constant dense<0xFF800000> : vector<16xf32>
    %111 = vector.multi_reduction <maximumf>, %110, %cst_39 [1] : vector<16x32xf32> to vector<16xf32>
    %112 = vector.shape_cast %111 : vector<16xf32> to vector<16x1xf32>
    %113 = vector.broadcast %112 : vector<16x1xf32> to vector<16x32xf32>
    %114 = arith.subf %110, %113 : vector<16x32xf32>
    %115 = math.exp %114 : vector<16x32xf32>
    %cst_40 = arith.constant dense<0.000000e+00> : vector<16xf32>
    %116 = vector.multi_reduction <add>, %115, %cst_40 [1] : vector<16x32xf32> to vector<16xf32>
    %117 = vector.shape_cast %116 : vector<16xf32> to vector<16x1xf32>
    %118 = tpu.reciprocal %117 {approx = true} : vector<16x1xf32> -> vector<16x1xf32>
    %119 = vector.broadcast %118 : vector<16x1xf32> to vector<16x32xf32>
    %120 = arith.mulf %115, %119 : vector<16x32xf32>
    %121 = arith.mulf %120, %22 : vector<16x32xf32>
    %122 = arith.addf %109, %121 : vector<16x32xf32>
    %123 = arith.addf %25, %108 : vector<16x32xf32>
    %cst_41 = arith.constant dense<0xFF800000> : vector<16xf32>
    %124 = vector.multi_reduction <maximumf>, %123, %cst_41 [1] : vector<16x32xf32> to vector<16xf32>
    %125 = vector.shape_cast %124 : vector<16xf32> to vector<16x1xf32>
    %126 = vector.broadcast %125 : vector<16x1xf32> to vector<16x32xf32>
    %127 = arith.subf %123, %126 : vector<16x32xf32>
    %128 = math.exp %127 : vector<16x32xf32>
    %cst_42 = arith.constant dense<0.000000e+00> : vector<16xf32>
    %129 = vector.multi_reduction <add>, %128, %cst_42 [1] : vector<16x32xf32> to vector<16xf32>
    %130 = vector.shape_cast %129 : vector<16xf32> to vector<16x1xf32>
    %131 = tpu.reciprocal %130 {approx = true} : vector<16x1xf32> -> vector<16x1xf32>
    %132 = vector.broadcast %131 : vector<16x1xf32> to vector<16x32xf32>
    %133 = arith.mulf %128, %132 : vector<16x32xf32>
    %134 = arith.mulf %133, %28 : vector<16x32xf32>
    %135 = arith.addf %122, %134 : vector<16x32xf32>
    %136 = arith.addf %31, %108 : vector<16x32xf32>
    %cst_43 = arith.constant dense<0xFF800000> : vector<16xf32>
    %137 = vector.multi_reduction <maximumf>, %136, %cst_43 [1] : vector<16x32xf32> to vector<16xf32>
    %138 = vector.shape_cast %137 : vector<16xf32> to vector<16x1xf32>
    %139 = vector.broadcast %138 : vector<16x1xf32> to vector<16x32xf32>
    %140 = arith.subf %136, %139 : vector<16x32xf32>
    %141 = math.exp %140 : vector<16x32xf32>
    %cst_44 = arith.constant dense<0.000000e+00> : vector<16xf32>
    %142 = vector.multi_reduction <add>, %141, %cst_44 [1] : vector<16x32xf32> to vector<16xf32>
    %143 = vector.shape_cast %142 : vector<16xf32> to vector<16x1xf32>
    %144 = tpu.reciprocal %143 {approx = true} : vector<16x1xf32> -> vector<16x1xf32>
    %145 = vector.broadcast %144 : vector<16x1xf32> to vector<16x32xf32>
    %146 = arith.mulf %141, %145 : vector<16x32xf32>
    %147 = arith.mulf %146, %34 : vector<16x32xf32>
    %148 = arith.addf %135, %147 : vector<16x32xf32>
    %149 = arith.addf %37, %108 : vector<16x32xf32>
    %cst_45 = arith.constant dense<0xFF800000> : vector<16xf32>
    %150 = vector.multi_reduction <maximumf>, %149, %cst_45 [1] : vector<16x32xf32> to vector<16xf32>
    %151 = vector.shape_cast %150 : vector<16xf32> to vector<16x1xf32>
    %152 = vector.broadcast %151 : vector<16x1xf32> to vector<16x32xf32>
    %153 = arith.subf %149, %152 : vector<16x32xf32>
    %154 = math.exp %153 : vector<16x32xf32>
    %cst_46 = arith.constant dense<0.000000e+00> : vector<16xf32>
    %155 = vector.multi_reduction <add>, %154, %cst_46 [1] : vector<16x32xf32> to vector<16xf32>
    %156 = vector.shape_cast %155 : vector<16xf32> to vector<16x1xf32>
    %157 = tpu.reciprocal %156 {approx = true} : vector<16x1xf32> -> vector<16x1xf32>
    %158 = vector.broadcast %157 : vector<16x1xf32> to vector<16x32xf32>
    %159 = arith.mulf %154, %158 : vector<16x32xf32>
    %160 = arith.mulf %159, %40 : vector<16x32xf32>
    %161 = arith.addf %148, %160 : vector<16x32xf32>
    %cst_47 = arith.constant dense<0.000000e+00> : vector<16xf32>
    %162 = vector.multi_reduction <add>, %161, %cst_47 [1] : vector<16x32xf32> to vector<16xf32>
    %163 = vector.shape_cast %162 : vector<16xf32> to vector<1x16xf32>
    %164 = tpu.concatenate %102, %163 in 0 : vector<1x16xf32>, vector<1x16xf32> -> vector<2x16xf32>
    %c0_48 = arith.constant 0 : index
    %c0_49 = arith.constant 0 : index
    %165 = vector.load %arg7[%c0_48, %c0_49] : memref<1x16xf32, #tpu.memory_space<vmem>>, vector<1x16xf32>
    %166 = vector.broadcast %165 : vector<1x16xf32> to vector<2x16xf32>
    %167 = arith.addf %164, %166 : vector<2x16xf32>
    %c0_50 = arith.constant 0 : index
    %c0_51 = arith.constant 0 : index
    %168 = vector.load %arg9[%c0_50, %c0_51] : memref<2x16xf32, #tpu.memory_space<vmem>>, vector<2x16xf32>
    tpu.vector_store %arg9[%c0_50, %c0_51], %167 {strides = array<i32>} : memref<2x16xf32, #tpu.memory_space<vmem>>, vector<2x16xf32>,
    return
  }
}

</mosaic_0001>

<llo_original>
// kernel: tpu_custom_call.1
$region0: #{tpu_custom_call.1}
  #allocation0 [shape = 'u32[]', space=smem, size = 0x4, offset = 0x4, fixed_abs, tag = 'smem constant byte address 0x4 - core index']
  #allocation1 [shape = 'u32[144,128]{1,0:T(1,128)}', space=vmem, size = 0x12000, scoped, tag = 'internal scratch']
  %s0 = inlined_call_operand.vmem [shape: f32[16,32], index: 0, kind: input, shape index: {}]
  %s1 = inlined_call_operand.vmem [shape: f32[32,32], index: 1, kind: input, shape index: {}]
  %s2 = inlined_call_operand.vmem [shape: f32[32,32], index: 2, kind: input, shape index: {}]
  %s3 = inlined_call_operand.vmem [shape: f32[64,32], index: 3, kind: input, shape index: {}]
  %s4 = inlined_call_operand.vmem [shape: f32[1,32], index: 4, kind: input, shape index: {}]
  %s5 = inlined_call_operand.vmem [shape: f32[1,64], index: 5, kind: input, shape index: {}]
  %s6 = inlined_call_operand.vmem [shape: f32[16,32], index: 6, kind: input, shape index: {}]
  %s7 = inlined_call_operand.vmem [shape: f32[1,16], index: 7, kind: input, shape index: {}]
  %s8 = inlined_call_operand.vmem [shape: s32[2], index: 8, kind: input, shape index: {}]
  %s9 = inlined_call_operand.hbm [shape: f32[2,16], index: 9, kind: output, shape index: {}]
  %s10 = sld [smem:[#allocation0]]
  $region50: #{tpu_custom_call.1} parent=0
    _
  %s12 = ssub.s32 1, %s10
  %s13 = scalar_select 0, %s12, %s10
  $region1: #{tpu_custom_call.1} parent=0
    #allocation2 [shape = 'u8[512]{0}', space=smem, size = 0x200, scoped, tag = 'input window, operand 8, single buffered']
    #allocation3 [shape = 's32[1]{0}', space=sflag, size = 0x4, scoped, tag = 'scoped memory for tpu_custom_call.1']
    #allocation4 [shape = 's32[1]{0}', space=sflag, size = 0x4, scoped, tag = 'scoped memory for tpu_custom_call.1']
    #allocation5 [shape = 'u8[1024]{0}', space=vmem, size = 0x400, scoped, tag = 'output window, operand 0, single buffered']
    %14 = vsyncpa [#allocation4], 0
    %15 = vsyncpa [#allocation3], 0
    // Predicated region
    $region2: #{tpu_custom_call.1} parent=1 // pred_check
      _
    $region3: #{tpu_custom_call.1} parent=1 // pred_check_branch
      %17 = sbr.rel (0) target = $region5
    $region4: #{tpu_custom_call.1} parent=1 // pred_region
      _
    $region5: #{tpu_custom_call.1} parent=1 // pred_fallthru
      _
    // Predicated region
    $region6: #{tpu_custom_call.1} parent=1 // pred_check
      _
    $region7: #{tpu_custom_call.1} parent=1 // pred_check_branch
      %19 = sbr.rel (0) target = $region9
    $region8: #{tpu_custom_call.1} parent=1 // pred_region
      _
    $region9: #{tpu_custom_call.1} parent=1 // pred_fallthru
      _
    // Predicated region
    $region10: #{tpu_custom_call.1} parent=1 // pred_check
      _
    $region11: #{tpu_custom_call.1} parent=1 // pred_check_branch
      %21 = sbr.rel (0) target = $region13
    $region12: #{tpu_custom_call.1} parent=1 // pred_region
      _
    $region13: #{tpu_custom_call.1} parent=1 // pred_fallthru
      _
    // Predicated region
    $region14: #{tpu_custom_call.1} parent=1 // pred_check
      _
    $region15: #{tpu_custom_call.1} parent=1 // pred_check_branch
      %23 = sbr.rel (0) target = $region17
    $region16: #{tpu_custom_call.1} parent=1 // pred_region
      _
    $region17: #{tpu_custom_call.1} parent=1 // pred_fallthru
      _
    // Predicated region
    $region18: #{tpu_custom_call.1} parent=1 // pred_check
      _
    $region19: #{tpu_custom_call.1} parent=1 // pred_check_branch
      %25 = sbr.rel (0) target = $region21
    $region20: #{tpu_custom_call.1} parent=1 // pred_region
      _
    $region21: #{tpu_custom_call.1} parent=1 // pred_fallthru
      _
    // Predicated region
    $region22: #{tpu_custom_call.1} parent=1 // pred_check
      _
    $region23: #{tpu_custom_call.1} parent=1 // pred_check_branch
      %27 = sbr.rel (0) target = $region25
    $region24: #{tpu_custom_call.1} parent=1 // pred_region
      _
    $region25: #{tpu_custom_call.1} parent=1 // pred_fallthru
      _
    // Predicated region
    $region26: #{tpu_custom_call.1} parent=1 // pred_check
      _
    $region27: #{tpu_custom_call.1} parent=1 // pred_check_branch
      %29 = sbr.rel (0) target = $region29
    $region28: #{tpu_custom_call.1} parent=1 // pred_region
      _
    $region29: #{tpu_custom_call.1} parent=1 // pred_fallthru
      _
    // Predicated region
    $region30: #{tpu_custom_call.1} parent=1 // pred_check
      _
    $region31: #{tpu_custom_call.1} parent=1 // pred_check_branch
      %31 = sbr.rel (0) target = $region33
    $region32: #{tpu_custom_call.1} parent=1 // pred_region
      _
    $region33: #{tpu_custom_call.1} parent=1 // pred_fallthru
      _
    // Predicated region
    $region34: #{tpu_custom_call.1} parent=1 // pred_check
      _
    $region35: #{tpu_custom_call.1} parent=1 // pred_check_branch
      %33 = sbr.rel (0) target = $region37
    $region36: #{tpu_custom_call.1} parent=1 // pred_region
      %s35 = ssub.s32 16, 16
      %36 = vsyncadd [#allocation4], %s35
      %s38 = sshll.u32 %s8, 4
      %s39 = int_to_ptr.vmem [resolvable:$true] %s38
      %41 = dma.vmem_to_smem %s39, 16, [#allocation2], [#allocation4]
    $region37: #{tpu_custom_call.1} parent=1 // pred_fallthru
      _
    // Predicated region
    $region38: #{tpu_custom_call.1} parent=1 // pred_check
      _
    $region39: #{tpu_custom_call.1} parent=1 // pred_check_branch
      %43 = sbr.rel (0) target = $region41
    $region40: #{tpu_custom_call.1} parent=1 // pred_region
      %44 = dma.done [#allocation4], 16
    $region41: #{tpu_custom_call.1} parent=1 // pred_fallthru
      _
    %45 = sfence
    %v46 = vld [vmem:[%s0] sm:$0xff]
    %v47 = vld [vmem:[%s0 + $0x8] sm:$0xff]
    %v48 = vld [vmem:[%s2] sm:$0xff]
    %v49 = vld [vmem:[%s2 + $0x8] sm:$0xff]
    %v50 = vld [vmem:[%s2 + $0x10] sm:$0xff]
    %v51 = vld [vmem:[%s2 + $0x18] sm:$0xff]
    %v52 = vld [vmem:[%s4] sm:$0x1]
    %v54 = vlaneseq
    %v55 = vshrl.u32 %v54, 7
    %v56 = vsub.s32 0, %v55
    %v57 = vrot.slane %v52, %v56
    %vm59 = vcmask 261120
    %v61 = vsel %vm59, %v46, 0
    %v64 = vsel %vm59, %v47, 0
    %v67 = vsel %vm59, %v48, 0
    %v70 = vsel %vm59, %v49, 0
    %v73 = vsel %vm59, %v50, 0
    %v76 = vsel %vm59, %v51, 0
    %78 = vmatprep.subr.mxu0 0.0
    %79 = vmatpush1.xpose.msra.mxu0 0.0
    %80 = vmatprep.subr.mxu0 0.0
    %81 = vmatpush1.xpose.msra.mxu0 0.0
    %82 = vmatprep.subr.mxu0 0.0
    %83 = vmatpush1.xpose.msra.mxu0 0.0
    %84 = vmatprep.subr.mxu0 0.0
    %85 = vmatpush1.xpose.msra.mxu0 0.0
    %86 = vmatprep.subr.mxu0 0.0
    %87 = vmatpush1.xpose.msra.mxu0 0.0
    %88 = vmatprep.subr.mxu0 0.0
    %89 = vmatpush1.xpose.msra.mxu0 0.0
    %90 = vmatprep.subr.mxu0 0.0
    %91 = vmatpush1.xpose.msra.mxu0 0.0
    %92 = vmatprep.subr.mxu0 0.0
    %93 = vmatpush1.xpose.msra.mxu0 0.0
    %94 = vmatprep.subr.mxu0 0.0
    %95 = vmatpush1.xpose.msra.mxu0 0.0
    %96 = vmatprep.subr.mxu0 0.0
    %97 = vmatpush1.xpose.msra.mxu0 0.0
    %98 = vmatprep.subr.mxu0 0.0
    %99 = vmatpush1.xpose.msra.mxu0 0.0
    %100 = vmatprep.subr.mxu0 0.0
    %101 = vmatpush1.xpose.msra.mxu0 0.0
    %102 = vmatprep.subr.mxu0 0.0
    %103 = vmatpush1.xpose.msra.mxu0 %v76
    %104 = vmatprep.subr.mxu0 0.0
    %105 = vmatpush1.xpose.msra.mxu0 %v73
    %106 = vmatprep.subr.mxu0 0.0
    %107 = vmatpush1.xpose.msra.mxu0 %v70
    %108 = vmatprep.subr.mxu0 0.0
    %109 = vmatpush1.xpose.msra.mxu0 %v67
    %110 = vmatprep.subr.mxu0 0.0
    %111 = vmatpush2.xpose.msra.mxu0 0.0
    %112 = vmatprep.subr.mxu0 0.0
    %113 = vmatpush2.xpose.msra.mxu0 0.0
    %114 = vmatprep.subr.mxu0 0.0
    %115 = vmatpush2.xpose.msra.mxu0 0.0
    %116 = vmatprep.subr.mxu0 0.0
    %117 = vmatpush2.xpose.msra.mxu0 0.0
    %118 = vmatprep.subr.mxu0 0.0
    %119 = vmatpush2.xpose.msra.mxu0 0.0
    %120 = vmatprep.subr.mxu0 0.0
    %121 = vmatpush2.xpose.msra.mxu0 0.0
    %122 = vmatprep.subr.mxu0 0.0
    %123 = vmatpush2.xpose.msra.mxu0 0.0
    %124 = vmatprep.subr.mxu0 0.0
    %125 = vmatpush2.xpose.msra.mxu0 0.0
    %126 = vmatprep.subr.mxu0 0.0
    %127 = vmatpush2.xpose.msra.mxu0 0.0
    %128 = vmatprep.subr.mxu0 0.0
    %129 = vmatpush2.xpose.msra.mxu0 0.0
    %130 = vmatprep.subr.mxu0 0.0
    %131 = vmatpush2.xpose.msra.mxu0 0.0
    %132 = vmatprep.subr.mxu0 0.0
    %133 = vmatpush2.xpose.msra.mxu0 0.0
    %134 = vmatprep.subr.mxu0 0.0
    %135 = vmatpush2.xpose.msra.mxu0 0.0
    %136 = vmatprep.subr.mxu0 0.0
    %137 = vmatpush2.xpose.msra.mxu0 0.0
    %138 = vmatprep.subr.mxu0 0.0
    %139 = vmatpush2.xpose.msra.mxu0 0.0
    %140 = vmatprep.subr.mxu0 0.0
    %141 = vmatpush2.xpose.msra.mxu0 0.0
    %142 = vmatprep.mubr.f32.mxu0 0.0
    %143 = vmatmul.mubr.f32.gmra.mxu0 %v61
    %v144 = vpop.f32.mrf.mxu0
    %v145 = vadd.f32 %v57, %v144
    %v146 = vpop.f32.mrf.mxu0
    %147 = vmatprep.mubr.f32.mxu0 0.0
    %148 = vmatmul.mubr.f32.gmra.mxu0 %v64
    %v149 = vpop.f32.mrf.mxu0
    %v150 = vadd.f32 %v57, %v149
    %v151 = vpop.f32.mrf.mxu0
    %152 = vdwg.mxu0
    %v153 = vmul.f32 %v145, 0.35355338
    %v154 = vmul.f32 %v150, 0.35355338
    %v155 = vld [vmem:[%s1] sm:$0xff]
    %v156 = vld [vmem:[%s1 + $0x8] sm:$0xff]
    %v157 = vld [vmem:[%s1 + $0x10] sm:$0xff]
    %v158 = vld [vmem:[%s1 + $0x18] sm:$0xff]
    %v159 = vld [vmem:[%s3] sm:$0xff]
    %v160 = vld [vmem:[%s3 + $0x8] sm:$0xff]
    %v161 = vld [vmem:[%s3 + $0x10] sm:$0xff]
    %v162 = vld [vmem:[%s3 + $0x18] sm:$0xff]
    %v163 = vld [vmem:[%s3 + $0x20] sm:$0xff]
    %v164 = vld [vmem:[%s3 + $0x28] sm:$0xff]
    %v165 = vld [vmem:[%s3 + $0x30] sm:$0xff]
    %v166 = vld [vmem:[%s3 + $0x38] sm:$0xff]
    %v167 = vld [vmem:[%s5] sm:$0x1]
    %v169 = vlaneseq
    %v170 = vshrl.u32 %v169, 7
    %v171 = vsub.s32 0, %v170
    %v172 = vrot.slane %v167, %v171
    %v175 = vsel %vm59, %v155, 0
    %v178 = vsel %vm59, %v156, 0
    %v181 = vsel %vm59, %v157, 0
    %v184 = vsel %vm59, %v158, 0
    %v187 = vsel %vm59, %v159, 0
    %v190 = vsel %vm59, %v160, 0
    %v193 = vsel %vm59, %v161, 0
    %v196 = vsel %vm59, %v162, 0
    %v199 = vsel %vm59, %v163, 0
    %v202 = vsel %vm59, %v164, 0
    %v205 = vsel %vm59, %v165, 0
    %v208 = vsel %vm59, %v166, 0
    %210 = vmatprep.subr.mxu0 0.0
    %211 = vmatpush1.xpose.msra.mxu0 0.0
    %212 = vmatprep.subr.mxu0 0.0
    %213 = vmatpush1.xpose.msra.mxu0 0.0
    %214 = vmatprep.subr.mxu0 0.0
    %215 = vmatpush1.xpose.msra.mxu0 0.0
    %216 = vmatprep.subr.mxu0 0.0
    %217 = vmatpush1.xpose.msra.mxu0 0.0
    %218 = vmatprep.subr.mxu0 0.0
    %219 = vmatpush1.xpose.msra.mxu0 0.0
    %220 = vmatprep.subr.mxu0 0.0
    %221 = vmatpush1.xpose.msra.mxu0 0.0
    %222 = vmatprep.subr.mxu0 0.0
    %223 = vmatpush1.xpose.msra.mxu0 0.0
    %224 = vmatprep.subr.mxu0 0.0
    %225 = vmatpush1.xpose.msra.mxu0 0.0
    %226 = vmatprep.subr.mxu0 0.0
    %227 = vmatpush1.xpose.msra.mxu0 %v208
    %228 = vmatprep.subr.mxu0 0.0
    %229 = vmatpush1.xpose.msra.mxu0 %v205
    %230 = vmatprep.subr.mxu0 0.0
    %231 = vmatpush1.xpose.msra.mxu0 %v202
    %232 = vmatprep.subr.mxu0 0.0
    %233 = vmatpush1.xpose.msra.mxu0 %v199
    %234 = vmatprep.subr.mxu0 0.0
    %235 = vmatpush1.xpose.msra.mxu0 %v196
    %236 = vmatprep.subr.mxu0 0.0
    %237 = vmatpush1.xpose.msra.mxu0 %v193
    %238 = vmatprep.subr.mxu0 0.0
    %239 = vmatpush1.xpose.msra.mxu0 %v190
    %240 = vmatprep.subr.mxu0 0.0
    %241 = vmatpush1.xpose.msra.mxu0 %v187
    %242 = vmatprep.subr.mxu0 0.0
    %243 = vmatpush2.xpose.msra.mxu0 0.0
    %244 = vmatprep.subr.mxu0 0.0
    %245 = vmatpush2.xpose.msra.mxu0 0.0
    %246 = vmatprep.subr.mxu0 0.0
    %247 = vmatpush2.xpose.msra.mxu0 0.0
    %248 = vmatprep.subr.mxu0 0.0
    %249 = vmatpush2.xpose.msra.mxu0 0.0
    %250 = vmatprep.subr.mxu0 0.0
    %251 = vmatpush2.xpose.msra.mxu0 0.0
    %252 = vmatprep.subr.mxu0 0.0
    %253 = vmatpush2.xpose.msra.mxu0 0.0
    %254 = vmatprep.subr.mxu0 0.0
    %255 = vmatpush2.xpose.msra.mxu0 0.0
    %256 = vmatprep.subr.mxu0 0.0
    %257 = vmatpush2.xpose.msra.mxu0 0.0
    %258 = vmatprep.subr.mxu0 0.0
    %259 = vmatpush2.xpose.msra.mxu0 0.0
    %260 = vmatprep.subr.mxu0 0.0
    %261 = vmatpush2.xpose.msra.mxu0 0.0
    %262 = vmatprep.subr.mxu0 0.0
    %263 = vmatpush2.xpose.msra.mxu0 0.0
    %264 = vmatprep.subr.mxu0 0.0
    %265 = vmatpush2.xpose.msra.mxu0 0.0
    %266 = vmatprep.subr.mxu0 0.0
    %267 = vmatpush2.xpose.msra.mxu0 0.0
    %268 = vmatprep.subr.mxu0 0.0
    %269 = vmatpush2.xpose.msra.mxu0 0.0
    %270 = vmatprep.subr.mxu0 0.0
    %271 = vmatpush2.xpose.msra.mxu0 0.0
    %272 = vmatprep.subr.mxu0 0.0
    %273 = vmatpush2.xpose.msra.mxu0 0.0
    %274 = vmatprep.mubr.f32.mxu0 0.0
    %275 = vmatmul.mubr.f32.gmra.mxu0 %v175
    %v276 = vpop.f32.mrf.mxu0
    %v277 = vadd.f32 %v172, %v276
    %v278 = vpop.f32.mrf.mxu0
    %279 = vmatprep.mubr.f32.mxu0 0.0
    %280 = vmatmul.mubr.f32.gmra.mxu0 %v178
    %v281 = vpop.f32.mrf.mxu0
    %v282 = vadd.f32 %v172, %v281
    %v283 = vpop.f32.mrf.mxu0
    %284 = vmatprep.mubr.f32.mxu0 0.0
    %285 = vmatmul.mubr.f32.gmra.mxu0 %v181
    %v286 = vpop.f32.mrf.mxu0
    %v287 = vadd.f32 %v172, %v286
    %v288 = vpop.f32.mrf.mxu0
    %289 = vmatprep.mubr.f32.mxu0 0.0
    %290 = vmatmul.mubr.f32.gmra.mxu0 %v184
    %v291 = vpop.f32.mrf.mxu0
    %v292 = vadd.f32 %v172, %v291
    %v293 = vpop.f32.mrf.mxu0
    %294 = vdwg.mxu0
    %v295 = vld [vmem:[%s6] sm:$0xff]
    %v296 = vld [vmem:[%s6 + $0x8] sm:$0xff]
    %vm297 = vcmask 64512
    %v299 = vsel %vm297, %v153, 0
    %v302 = vsel %vm297, %v154, 0
    %v305 = vsel %vm297, %v277, 0
    %v308 = vsel %vm297, %v282, 0
    %v311 = vsel %vm297, %v287, 0
    %v314 = vsel %vm297, %v292, 0
    %316 = vmatprep.subr.mxu0 0.0
    %317 = vmatpush1.xpose.msra.mxu0 0.0
    %318 = vmatprep.subr.mxu0 0.0
    %319 = vmatpush1.xpose.msra.mxu0 0.0
    %320 = vmatprep.subr.mxu0 0.0
    %321 = vmatpush1.xpose.msra.mxu0 0.0
    %322 = vmatprep.subr.mxu0 0.0
    %323 = vmatpush1.xpose.msra.mxu0 0.0
    %324 = vmatprep.subr.mxu0 0.0
    %325 = vmatpush1.xpose.msra.mxu0 0.0
    %326 = vmatprep.subr.mxu0 0.0
    %327 = vmatpush1.xpose.msra.mxu0 0.0
    %328 = vmatprep.subr.mxu0 0.0
    %329 = vmatpush1.xpose.msra.mxu0 0.0
    %330 = vmatprep.subr.mxu0 0.0
    %331 = vmatpush1.xpose.msra.mxu0 0.0
    %332 = vmatprep.subr.mxu0 0.0
    %333 = vmatpush1.xpose.msra.mxu0 0.0
    %334 = vmatprep.subr.mxu0 0.0
    %335 = vmatpush1.xpose.msra.mxu0 0.0
    %336 = vmatprep.subr.mxu0 0.0
    %337 = vmatpush1.xpose.msra.mxu0 0.0
    %338 = vmatprep.subr.mxu0 0.0
    %339 = vmatpush1.xpose.msra.mxu0 0.0
    %340 = vmatprep.subr.mxu0 0.0
    %341 = vmatpush1.xpose.msra.mxu0 %v314
    %342 = vmatprep.subr.mxu0 0.0
    %343 = vmatpush1.xpose.msra.mxu0 %v311
    %344 = vmatprep.subr.mxu0 0.0
    %345 = vmatpush1.xpose.msra.mxu0 %v308
    %346 = vmatprep.subr.mxu0 0.0
    %347 = vmatpush1.xpose.msra.mxu0 %v305
    %348 = vmatprep.subr.mxu0 0.0
    %349 = vmatpush2.xpose.msra.mxu0 0.0
    %350 = vmatprep.subr.mxu0 0.0
    %351 = vmatpush2.xpose.msra.mxu0 0.0
    %352 = vmatprep.subr.mxu0 0.0
    %353 = vmatpush2.xpose.msra.mxu0 0.0
    %354 = vmatprep.subr.mxu0 0.0
    %355 = vmatpush2.xpose.msra.mxu0 0.0
    %356 = vmatprep.subr.mxu0 0.0
    %357 = vmatpush2.xpose.msra.mxu0 0.0
    %358 = vmatprep.subr.mxu0 0.0
    %359 = vmatpush2.xpose.msra.mxu0 0.0
    %360 = vmatprep.subr.mxu0 0.0
    %361 = vmatpush2.xpose.msra.mxu0 0.0
    %362 = vmatprep.subr.mxu0 0.0
    %363 = vmatpush2.xpose.msra.mxu0 0.0
    %364 = vmatprep.subr.mxu0 0.0
    %365 = vmatpush2.xpose.msra.mxu0 0.0
    %366 = vmatprep.subr.mxu0 0.0
    %367 = vmatpush2.xpose.msra.mxu0 0.0
    %368 = vmatprep.subr.mxu0 0.0
    %369 = vmatpush2.xpose.msra.mxu0 0.0
    %370 = vmatprep.subr.mxu0 0.0
    %371 = vmatpush2.xpose.msra.mxu0 0.0
    %372 = vmatprep.subr.mxu0 0.0
    %373 = vmatpush2.xpose.msra.mxu0 0.0
    %374 = vmatprep.subr.mxu0 0.0
    %375 = vmatpush2.xpose.msra.mxu0 0.0
    %376 = vmatprep.subr.mxu0 0.0
    %377 = vmatpush2.xpose.msra.mxu0 0.0
    %378 = vmatprep.subr.mxu0 0.0
    %379 = vmatpush2.xpose.msra.mxu0 0.0
    %380 = vmatprep.mubr.f32.mxu0 0.0
    %381 = vmatmul.mubr.f32.gmra.mxu0 %v299
    %v382 = vpop.f32.mrf.mxu0
    %v383 = vadd.f32 0.0, %v382
    %v384 = vpop.f32.mrf.mxu0
    %385 = vmatprep.mubr.f32.mxu0 0.0
    %386 = vmatmul.mubr.f32.gmra.mxu0 %v302
    %v387 = vpop.f32.mrf.mxu0
    %v388 = vadd.f32 0.0, %v387
    %v389 = vpop.f32.mrf.mxu0
    %390 = vdwg.mxu0
    %391 = vrot.lane.b32.xlu0 %v277, 96
    %v392 = vpop.permute.xlu0 %391
    %393 = vrot.lane.b32.xlu0 %v282, 96
    %v394 = vpop.permute.xlu0 %393
    %395 = vrot.lane.b32.xlu0 %v287, 96
    %v396 = vpop.permute.xlu0 %395
    %397 = vrot.lane.b32.xlu0 %v292, 96
    %v398 = vpop.permute.xlu0 %397
    %v400 = vsel %vm297, %v295, 0
    %v403 = vsel %vm297, %v296, 0
    %v405 = vsel %vm297, %v392, 0
    %v407 = vsel %vm297, %v394, 0
    %v409 = vsel %vm297, %v396, 0
    %v411 = vsel %vm297, %v398, 0
    %413 = vmatprep.subr.mxu0 0.0
    %414 = vmatpush1.xpose.msra.mxu0 0.0
    %415 = vmatprep.subr.mxu0 0.0
    %416 = vmatpush1.xpose.msra.mxu0 0.0
    %417 = vmatprep.subr.mxu0 0.0
    %418 = vmatpush1.xpose.msra.mxu0 0.0
    %419 = vmatprep.subr.mxu0 0.0
    %420 = vmatpush1.xpose.msra.mxu0 0.0
    %421 = vmatprep.subr.mxu0 0.0
    %422 = vmatpush1.xpose.msra.mxu0 0.0
    %423 = vmatprep.subr.mxu0 0.0
    %424 = vmatpush1.xpose.msra.mxu0 0.0
    %425 = vmatprep.subr.mxu0 0.0
    %426 = vmatpush1.xpose.msra.mxu0 0.0
    %427 = vmatprep.subr.mxu0 0.0
    %428 = vmatpush1.xpose.msra.mxu0 0.0
    %429 = vmatprep.subr.mxu0 0.0
    %430 = vmatpush1.xpose.msra.mxu0 0.0
    %431 = vmatprep.subr.mxu0 0.0
    %432 = vmatpush1.xpose.msra.mxu0 0.0
    %433 = vmatprep.subr.mxu0 0.0
    %434 = vmatpush1.xpose.msra.mxu0 0.0
    %435 = vmatprep.subr.mxu0 0.0
    %436 = vmatpush1.xpose.msra.mxu0 0.0
    %437 = vmatprep.subr.mxu0 0.0
    %438 = vmatpush1.xpose.msra.mxu0 %v411
    %439 = vmatprep.subr.mxu0 0.0
    %440 = vmatpush1.xpose.msra.mxu0 %v409
    %441 = vmatprep.subr.mxu0 0.0
    %442 = vmatpush1.xpose.msra.mxu0 %v407
    %443 = vmatprep.subr.mxu0 0.0
    %444 = vmatpush1.xpose.msra.mxu0 %v405
    %445 = vmatprep.subr.mxu0 0.0
    %446 = vmatpush2.xpose.msra.mxu0 0.0
    %447 = vmatprep.subr.mxu0 0.0
    %448 = vmatpush2.xpose.msra.mxu0 0.0
    %449 = vmatprep.subr.mxu0 0.0
    %450 = vmatpush2.xpose.msra.mxu0 0.0
    %451 = vmatprep.subr.mxu0 0.0
    %452 = vmatpush2.xpose.msra.mxu0 0.0
    %453 = vmatprep.subr.mxu0 0.0
    %454 = vmatpush2.xpose.msra.mxu0 0.0
    %455 = vmatprep.subr.mxu0 0.0
    %456 = vmatpush2.xpose.msra.mxu0 0.0
    %457 = vmatprep.subr.mxu0 0.0
    %458 = vmatpush2.xpose.msra.mxu0 0.0
    %459 = vmatprep.subr.mxu0 0.0
    %460 = vmatpush2.xpose.msra.mxu0 0.0
    %461 = vmatprep.subr.mxu0 0.0
    %462 = vmatpush2.xpose.msra.mxu0 0.0
    %463 = vmatprep.subr.mxu0 0.0
    %464 = vmatpush2.xpose.msra.mxu0 0.0
    %465 = vmatprep.subr.mxu0 0.0
    %466 = vmatpush2.xpose.msra.mxu0 0.0
    %467 = vmatprep.subr.mxu0 0.0
    %468 = vmatpush2.xpose.msra.mxu0 0.0
    %469 = vmatprep.subr.mxu0 0.0
    %470 = vmatpush2.xpose.msra.mxu0 0.0
    %471 = vmatprep.subr.mxu0 0.0
    %472 = vmatpush2.xpose.msra.mxu0 0.0
    %473 = vmatprep.subr.mxu0 0.0
    %474 = vmatpush2.xpose.msra.mxu0 0.0
    %475 = vmatprep.subr.mxu0 0.0
    %476 = vmatpush2.xpose.msra.mxu0 0.0
    %477 = vmatprep.mubr.f32.mxu0 0.0
    %478 = vmatmul.mubr.f32.gmra.mxu0 %v400
    %v479 = vpop.f32.mrf.mxu0
    %v480 = vadd.f32 0.0, %v479
    %v481 = vpop.f32.mrf.mxu0
    %482 = vmatprep.mubr.f32.mxu0 0.0
    %483 = vmatmul.mubr.f32.gmra.mxu0 %v403
    %v484 = vpop.f32.mrf.mxu0
    %v485 = vadd.f32 0.0, %v484
    %v486 = vpop.f32.mrf.mxu0
    %487 = vdwg.mxu0
    %488 = vrot.lane.b32.xlu0 %v153, 120
    %v489 = vpop.permute.xlu0 %488
    %490 = vrot.lane.b32.xlu0 %v154, 120
    %v491 = vpop.permute.xlu0 %490
    %492 = vrot.lane.b32.xlu0 %v277, 120
    %v493 = vpop.permute.xlu0 %492
    %494 = vrot.lane.b32.xlu0 %v282, 120
    %v495 = vpop.permute.xlu0 %494
    %496 = vrot.lane.b32.xlu0 %v287, 120
    %v497 = vpop.permute.xlu0 %496
    %498 = vrot.lane.b32.xlu0 %v292, 120
    %v499 = vpop.permute.xlu0 %498
    %v500 = vsel %vm297, %v489, 0
    %v502 = vsel %vm297, %v491, 0
    %v504 = vsel %vm297, %v493, 0
    %v506 = vsel %vm297, %v495, 0
    %v508 = vsel %vm297, %v497, 0
    %v510 = vsel %vm297, %v499, 0
    %512 = vmatprep.subr.mxu0 0.0
    %513 = vmatpush1.xpose.msra.mxu0 0.0
    %514 = vmatprep.subr.mxu0 0.0
    %515 = vmatpush1.xpose.msra.mxu0 0.0
    %516 = vmatprep.subr.mxu0 0.0
    %517 = vmatpush1.xpose.msra.mxu0 0.0
    %518 = vmatprep.subr.mxu0 0.0
    %519 = vmatpush1.xpose.msra.mxu0 0.0
    %520 = vmatprep.subr.mxu0 0.0
    %521 = vmatpush1.xpose.msra.mxu0 0.0
    %522 = vmatprep.subr.mxu0 0.0
    %523 = vmatpush1.xpose.msra.mxu0 0.0
    %524 = vmatprep.subr.mxu0 0.0
    %525 = vmatpush1.xpose.msra.mxu0 0.0
    %526 = vmatprep.subr.mxu0 0.0
    %527 = vmatpush1.xpose.msra.mxu0 0.0
    %528 = vmatprep.subr.mxu0 0.0
    %529 = vmatpush1.xpose.msra.mxu0 0.0
    %530 = vmatprep.subr.mxu0 0.0
    %531 = vmatpush1.xpose.msra.mxu0 0.0
    %532 = vmatprep.subr.mxu0 0.0
    %533 = vmatpush1.xpose.msra.mxu0 0.0
    %534 = vmatprep.subr.mxu0 0.0
    %535 = vmatpush1.xpose.msra.mxu0 0.0
    %536 = vmatprep.subr.mxu0 0.0
    %537 = vmatpush1.xpose.msra.mxu0 %v510
    %538 = vmatprep.subr.mxu0 0.0
    %539 = vmatpush1.xpose.msra.mxu0 %v508
    %540 = vmatprep.subr.mxu0 0.0
    %541 = vmatpush1.xpose.msra.mxu0 %v506
    %542 = vmatprep.subr.mxu0 0.0
    %543 = vmatpush1.xpose.msra.mxu0 %v504
    %544 = vmatprep.subr.mxu0 0.0
    %545 = vmatpush2.xpose.msra.mxu0 0.0
    %546 = vmatprep.subr.mxu0 0.0
    %547 = vmatpush2.xpose.msra.mxu0 0.0
    %548 = vmatprep.subr.mxu0 0.0
    %549 = vmatpush2.xpose.msra.mxu0 0.0
    %550 = vmatprep.subr.mxu0 0.0
    %551 = vmatpush2.xpose.msra.mxu0 0.0
    %552 = vmatprep.subr.mxu0 0.0
    %553 = vmatpush2.xpose.msra.mxu0 0.0
    %554 = vmatprep.subr.mxu0 0.0
    %555 = vmatpush2.xpose.msra.mxu0 0.0
    %556 = vmatprep.subr.mxu0 0.0
    %557 = vmatpush2.xpose.msra.mxu0 0.0
    %558 = vmatprep.subr.mxu0 0.0
    %559 = vmatpush2.xpose.msra.mxu0 0.0
    %560 = vmatprep.subr.mxu0 0.0
    %561 = vmatpush2.xpose.msra.mxu0 0.0
    %562 = vmatprep.subr.mxu0 0.0
    %563 = vmatpush2.xpose.msra.mxu0 0.0
    %564 = vmatprep.subr.mxu0 0.0
    %565 = vmatpush2.xpose.msra.mxu0 0.0
    %566 = vmatprep.subr.mxu0 0.0
    %567 = vmatpush2.xpose.msra.mxu0 0.0
    %568 = vmatprep.subr.mxu0 0.0
    %569 = vmatpush2.xpose.msra.mxu0 0.0
    %570 = vmatprep.subr.mxu0 0.0
    %571 = vmatpush2.xpose.msra.mxu0 0.0
    %572 = vmatprep.subr.mxu0 0.0
    %573 = vmatpush2.xpose.msra.mxu0 0.0
    %574 = vmatprep.subr.mxu0 0.0
    %575 = vmatpush2.xpose.msra.mxu0 0.0
    %576 = vmatprep.mubr.f32.mxu0 0.0
    %577 = vmatmul.mubr.f32.gmra.mxu0 %v500
    %v578 = vpop.f32.mrf.mxu0
    %v579 = vadd.f32 0.0, %v578
    %v580 = vpop.f32.mrf.mxu0
    %581 = vmatprep.mubr.f32.mxu0 0.0
    %582 = vmatmul.mubr.f32.gmra.mxu0 %v502
    %v583 = vpop.f32.mrf.mxu0
    %v584 = vadd.f32 0.0, %v583
    %v585 = vpop.f32.mrf.mxu0
    %586 = vdwg.mxu0
    %587 = vrot.lane.b32.xlu0 %v295, 120
    %v588 = vpop.permute.xlu0 %587
    %589 = vrot.lane.b32.xlu0 %v296, 120
    %v590 = vpop.permute.xlu0 %589
    %591 = vrot.lane.b32.xlu0 %v277, 88
    %v592 = vpop.permute.xlu0 %591
    %593 = vrot.lane.b32.xlu0 %v282, 88
    %v594 = vpop.permute.xlu0 %593
    %595 = vrot.lane.b32.xlu0 %v287, 88
    %v596 = vpop.permute.xlu0 %595
    %597 = vrot.lane.b32.xlu0 %v292, 88
    %v598 = vpop.permute.xlu0 %597
    %v599 = vsel %vm297, %v588, 0
    %v601 = vsel %vm297, %v590, 0
    %v603 = vsel %vm297, %v592, 0
    %v605 = vsel %vm297, %v594, 0
    %v607 = vsel %vm297, %v596, 0
    %v609 = vsel %vm297, %v598, 0
    %611 = vmatprep.subr.mxu0 0.0
    %612 = vmatpush1.xpose.msra.mxu0 0.0
    %613 = vmatprep.subr.mxu0 0.0
    %614 = vmatpush1.xpose.msra.mxu0 0.0
    %615 = vmatprep.subr.mxu0 0.0
    %616 = vmatpush1.xpose.msra.mxu0 0.0
    %617 = vmatprep.subr.mxu0 0.0
    %618 = vmatpush1.xpose.msra.mxu0 0.0
    %619 = vmatprep.subr.mxu0 0.0
    %620 = vmatpush1.xpose.msra.mxu0 0.0
    %621 = vmatprep.subr.mxu0 0.0
    %622 = vmatpush1.xpose.msra.mxu0 0.0
    %623 = vmatprep.subr.mxu0 0.0
    %624 = vmatpush1.xpose.msra.mxu0 0.0
    %625 = vmatprep.subr.mxu0 0.0
    %626 = vmatpush1.xpose.msra.mxu0 0.0
    %627 = vmatprep.subr.mxu0 0.0
    %628 = vmatpush1.xpose.msra.mxu0 0.0
    %629 = vmatprep.subr.mxu0 0.0
    %630 = vmatpush1.xpose.msra.mxu0 0.0
    %631 = vmatprep.subr.mxu0 0.0
    %632 = vmatpush1.xpose.msra.mxu0 0.0
    %633 = vmatprep.subr.mxu0 0.0
    %634 = vmatpush1.xpose.msra.mxu0 0.0
    %635 = vmatprep.subr.mxu0 0.0
    %636 = vmatpush1.xpose.msra.mxu0 %v609
    %637 = vmatprep.subr.mxu0 0.0
    %638 = vmatpush1.xpose.msra.mxu0 %v607
    %639 = vmatprep.subr.mxu0 0.0
    %640 = vmatpush1.xpose.msra.mxu0 %v605
    %641 = vmatprep.subr.mxu0 0.0
    %642 = vmatpush1.xpose.msra.mxu0 %v603
    %643 = vmatprep.subr.mxu0 0.0
    %644 = vmatpush2.xpose.msra.mxu0 0.0
    %645 = vmatprep.subr.mxu0 0.0
    %646 = vmatpush2.xpose.msra.mxu0 0.0
    %647 = vmatprep.subr.mxu0 0.0
    %648 = vmatpush2.xpose.msra.mxu0 0.0
    %649 = vmatprep.subr.mxu0 0.0
    %650 = vmatpush2.xpose.msra.mxu0 0.0
    %651 = vmatprep.subr.mxu0 0.0
    %652 = vmatpush2.xpose.msra.mxu0 0.0
    %653 = vmatprep.subr.mxu0 0.0
    %654 = vmatpush2.xpose.msra.mxu0 0.0
    %655 = vmatprep.subr.mxu0 0.0
    %656 = vmatpush2.xpose.msra.mxu0 0.0
    %657 = vmatprep.subr.mxu0 0.0
    %658 = vmatpush2.xpose.msra.mxu0 0.0
    %659 = vmatprep.subr.mxu0 0.0
    %660 = vmatpush2.xpose.msra.mxu0 0.0
    %661 = vmatprep.subr.mxu0 0.0
    %662 = vmatpush2.xpose.msra.mxu0 0.0
    %663 = vmatprep.subr.mxu0 0.0
    %664 = vmatpush2.xpose.msra.mxu0 0.0
    %665 = vmatprep.subr.mxu0 0.0
    %666 = vmatpush2.xpose.msra.mxu0 0.0
    %667 = vmatprep.subr.mxu0 0.0
    %668 = vmatpush2.xpose.msra.mxu0 0.0
    %669 = vmatprep.subr.mxu0 0.0
    %670 = vmatpush2.xpose.msra.mxu0 0.0
    %671 = vmatprep.subr.mxu0 0.0
    %672 = vmatpush2.xpose.msra.mxu0 0.0
    %673 = vmatprep.subr.mxu0 0.0
    %674 = vmatpush2.xpose.msra.mxu0 0.0
    %675 = vmatprep.mubr.f32.mxu0 0.0
    %676 = vmatmul.mubr.f32.gmra.mxu0 %v599
    %v677 = vpop.f32.mrf.mxu0
    %v678 = vadd.f32 0.0, %v677
    %v679 = vpop.f32.mrf.mxu0
    %680 = vmatprep.mubr.f32.mxu0 0.0
    %681 = vmatmul.mubr.f32.gmra.mxu0 %v601
    %v682 = vpop.f32.mrf.mxu0
    %v683 = vadd.f32 0.0, %v682
    %v684 = vpop.f32.mrf.mxu0
    %685 = vdwg.mxu0
    %686 = vrot.lane.b32.xlu0 %v153, 112
    %v687 = vpop.permute.xlu0 %686
    %688 = vrot.lane.b32.xlu0 %v154, 112
    %v689 = vpop.permute.xlu0 %688
    %690 = vrot.lane.b32.xlu0 %v277, 112
    %v691 = vpop.permute.xlu0 %690
    %692 = vrot.lane.b32.xlu0 %v282, 112
    %v693 = vpop.permute.xlu0 %692
    %694 = vrot.lane.b32.xlu0 %v287, 112
    %v695 = vpop.permute.xlu0 %694
    %696 = vrot.lane.b32.xlu0 %v292, 112
    %v697 = vpop.permute.xlu0 %696
    %v698 = vsel %vm297, %v687, 0
    %v700 = vsel %vm297, %v689, 0
    %v702 = vsel %vm297, %v691, 0
    %v704 = vsel %vm297, %v693, 0
    %v706 = vsel %vm297, %v695, 0
    %v708 = vsel %vm297, %v697, 0
    %710 = vmatprep.subr.mxu0 0.0
    %711 = vmatpush1.xpose.msra.mxu0 0.0
    %712 = vmatprep.subr.mxu0 0.0
    %713 = vmatpush1.xpose.msra.mxu0 0.0
    %714 = vmatprep.subr.mxu0 0.0
    %715 = vmatpush1.xpose.msra.mxu0 0.0
    %716 = vmatprep.subr.mxu0 0.0
    %717 = vmatpush1.xpose.msra.mxu0 0.0
    %718 = vmatprep.subr.mxu0 0.0
    %719 = vmatpush1.xpose.msra.mxu0 0.0
    %720 = vmatprep.subr.mxu0 0.0
    %721 = vmatpush1.xpose.msra.mxu0 0.0
    %722 = vmatprep.subr.mxu0 0.0
    %723 = vmatpush1.xpose.msra.mxu0 0.0
    %724 = vmatprep.subr.mxu0 0.0
    %725 = vmatpush1.xpose.msra.mxu0 0.0
    %726 = vmatprep.subr.mxu0 0.0
    %727 = vmatpush1.xpose.msra.mxu0 0.0
    %728 = vmatprep.subr.mxu0 0.0
    %729 = vmatpush1.xpose.msra.mxu0 0.0
    %730 = vmatprep.subr.mxu0 0.0
    %731 = vmatpush1.xpose.msra.mxu0 0.0
    %732 = vmatprep.subr.mxu0 0.0
    %733 = vmatpush1.xpose.msra.mxu0 0.0
    %734 = vmatprep.subr.mxu0 0.0
    %735 = vmatpush1.xpose.msra.mxu0 %v708
    %736 = vmatprep.subr.mxu0 0.0
    %737 = vmatpush1.xpose.msra.mxu0 %v706
    %738 = vmatprep.subr.mxu0 0.0
    %739 = vmatpush1.xpose.msra.mxu0 %v704
    %740 = vmatprep.subr.mxu0 0.0
    %741 = vmatpush1.xpose.msra.mxu0 %v702
    %742 = vmatprep.subr.mxu0 0.0
    %743 = vmatpush2.xpose.msra.mxu0 0.0
    %744 = vmatprep.subr.mxu0 0.0
    %745 = vmatpush2.xpose.msra.mxu0 0.0
    %746 = vmatprep.subr.mxu0 0.0
    %747 = vmatpush2.xpose.msra.mxu0 0.0
    %748 = vmatprep.subr.mxu0 0.0
    %749 = vmatpush2.xpose.msra.mxu0 0.0
    %750 = vmatprep.subr.mxu0 0.0
    %751 = vmatpush2.xpose.msra.mxu0 0.0
    %752 = vmatprep.subr.mxu0 0.0
    %753 = vmatpush2.xpose.msra.mxu0 0.0
    %754 = vmatprep.subr.mxu0 0.0
    %755 = vmatpush2.xpose.msra.mxu0 0.0
    %756 = vmatprep.subr.mxu0 0.0
    %757 = vmatpush2.xpose.msra.mxu0 0.0
    %758 = vmatprep.subr.mxu0 0.0
    %759 = vmatpush2.xpose.msra.mxu0 0.0
    %760 = vmatprep.subr.mxu0 0.0
    %761 = vmatpush2.xpose.msra.mxu0 0.0
    %762 = vmatprep.subr.mxu0 0.0
    %763 = vmatpush2.xpose.msra.mxu0 0.0
    %764 = vmatprep.subr.mxu0 0.0
    %765 = vmatpush2.xpose.msra.mxu0 0.0
    %766 = vmatprep.subr.mxu0 0.0
    %767 = vmatpush2.xpose.msra.mxu0 0.0
    %768 = vmatprep.subr.mxu0 0.0
    %769 = vmatpush2.xpose.msra.mxu0 0.0
    %770 = vmatprep.subr.mxu0 0.0
    %771 = vmatpush2.xpose.msra.mxu0 0.0
    %772 = vmatprep.subr.mxu0 0.0
    %773 = vmatpush2.xpose.msra.mxu0 0.0
    %774 = vmatprep.mubr.f32.mxu0 0.0
    %775 = vmatmul.mubr.f32.gmra.mxu0 %v698
    %v776 = vpop.f32.mrf.mxu0
    %v777 = vadd.f32 0.0, %v776
    %v778 = vpop.f32.mrf.mxu0
    %779 = vmatprep.mubr.f32.mxu0 0.0
    %780 = vmatmul.mubr.f32.gmra.mxu0 %v700
    %v781 = vpop.f32.mrf.mxu0
    %v782 = vadd.f32 0.0, %v781
    %v783 = vpop.f32.mrf.mxu0
    %784 = vdwg.mxu0
    %785 = vrot.lane.b32.xlu0 %v295, 112
    %v786 = vpop.permute.xlu0 %785
    %787 = vrot.lane.b32.xlu0 %v296, 112
    %v788 = vpop.permute.xlu0 %787
    %789 = vrot.lane.b32.xlu0 %v277, 80
    %v790 = vpop.permute.xlu0 %789
    %791 = vrot.lane.b32.xlu0 %v282, 80
    %v792 = vpop.permute.xlu0 %791
    %793 = vrot.lane.b32.xlu0 %v287, 80
    %v794 = vpop.permute.xlu0 %793
    %795 = vrot.lane.b32.xlu0 %v292, 80
    %v796 = vpop.permute.xlu0 %795
    %v797 = vsel %vm297, %v786, 0
    %v799 = vsel %vm297, %v788, 0
    %v801 = vsel %vm297, %v790, 0
    %v803 = vsel %vm297, %v792, 0
    %v805 = vsel %vm297, %v794, 0
    %v807 = vsel %vm297, %v796, 0
    %809 = vmatprep.subr.mxu0 0.0
    %810 = vmatpush1.xpose.msra.mxu0 0.0
    %811 = vmatprep.subr.mxu0 0.0
    %812 = vmatpush1.xpose.msra.mxu0 0.0
    %813 = vmatprep.subr.mxu0 0.0
    %814 = vmatpush1.xpose.msra.mxu0 0.0
    %815 = vmatprep.subr.mxu0 0.0
    %816 = vmatpush1.xpose.msra.mxu0 0.0
    %817 = vmatprep.subr.mxu0 0.0
    %818 = vmatpush1.xpose.msra.mxu0 0.0
    %819 = vmatprep.subr.mxu0 0.0
    %820 = vmatpush1.xpose.msra.mxu0 0.0
    %821 = vmatprep.subr.mxu0 0.0
    %822 = vmatpush1.xpose.msra.mxu0 0.0
    %823 = vmatprep.subr.mxu0 0.0
    %824 = vmatpush1.xpose.msra.mxu0 0.0
    %825 = vmatprep.subr.mxu0 0.0
    %826 = vmatpush1.xpose.msra.mxu0 0.0
    %827 = vmatprep.subr.mxu0 0.0
    %828 = vmatpush1.xpose.msra.mxu0 0.0
    %829 = vmatprep.subr.mxu0 0.0
    %830 = vmatpush1.xpose.msra.mxu0 0.0
    %831 = vmatprep.subr.mxu0 0.0
    %832 = vmatpush1.xpose.msra.mxu0 0.0
    %833 = vmatprep.subr.mxu0 0.0
    %834 = vmatpush1.xpose.msra.mxu0 %v807
    %835 = vmatprep.subr.mxu0 0.0
    %836 = vmatpush1.xpose.msra.mxu0 %v805
    %837 = vmatprep.subr.mxu0 0.0
    %838 = vmatpush1.xpose.msra.mxu0 %v803
    %839 = vmatprep.subr.mxu0 0.0
    %840 = vmatpush1.xpose.msra.mxu0 %v801
    %841 = vmatprep.subr.mxu0 0.0
    %842 = vmatpush2.xpose.msra.mxu0 0.0
    %843 = vmatprep.subr.mxu0 0.0
    %844 = vmatpush2.xpose.msra.mxu0 0.0
    %845 = vmatprep.subr.mxu0 0.0
    %846 = vmatpush2.xpose.msra.mxu0 0.0
    %847 = vmatprep.subr.mxu0 0.0
    %848 = vmatpush2.xpose.msra.mxu0 0.0
    %849 = vmatprep.subr.mxu0 0.0
    %850 = vmatpush2.xpose.msra.mxu0 0.0
    %851 = vmatprep.subr.mxu0 0.0
    %852 = vmatpush2.xpose.msra.mxu0 0.0
    %853 = vmatprep.subr.mxu0 0.0
    %854 = vmatpush2.xpose.msra.mxu0 0.0
    %855 = vmatprep.subr.mxu0 0.0
    %856 = vmatpush2.xpose.msra.mxu0 0.0
    %857 = vmatprep.subr.mxu0 0.0
    %858 = vmatpush2.xpose.msra.mxu0 0.0
    %859 = vmatprep.subr.mxu0 0.0
    %860 = vmatpush2.xpose.msra.mxu0 0.0
    %861 = vmatprep.subr.mxu0 0.0
    %862 = vmatpush2.xpose.msra.mxu0 0.0
    %863 = vmatprep.subr.mxu0 0.0
    %864 = vmatpush2.xpose.msra.mxu0 0.0
    %865 = vmatprep.subr.mxu0 0.0
    %866 = vmatpush2.xpose.msra.mxu0 0.0
    %867 = vmatprep.subr.mxu0 0.0
    %868 = vmatpush2.xpose.msra.mxu0 0.0
    %869 = vmatprep.subr.mxu0 0.0
    %870 = vmatpush2.xpose.msra.mxu0 0.0
    %871 = vmatprep.subr.mxu0 0.0
    %872 = vmatpush2.xpose.msra.mxu0 0.0
    %873 = vmatprep.mubr.f32.mxu0 0.0
    %874 = vmatmul.mubr.f32.gmra.mxu0 %v797
    %v875 = vpop.f32.mrf.mxu0
    %v876 = vadd.f32 0.0, %v875
    %v877 = vpop.f32.mrf.mxu0
    %878 = vmatprep.mubr.f32.mxu0 0.0
    %879 = vmatmul.mubr.f32.gmra.mxu0 %v799
    %v880 = vpop.f32.mrf.mxu0
    %v881 = vadd.f32 0.0, %v880
    %v882 = vpop.f32.mrf.mxu0
    %883 = vdwg.mxu0
    %884 = vrot.lane.b32.xlu0 %v153, 104
    %v885 = vpop.permute.xlu0 %884
    %886 = vrot.lane.b32.xlu0 %v154, 104
    %v887 = vpop.permute.xlu0 %886
    %888 = vrot.lane.b32.xlu0 %v277, 104
    %v889 = vpop.permute.xlu0 %888
    %890 = vrot.lane.b32.xlu0 %v282, 104
    %v891 = vpop.permute.xlu0 %890
    %892 = vrot.lane.b32.xlu0 %v287, 104
    %v893 = vpop.permute.xlu0 %892
    %894 = vrot.lane.b32.xlu0 %v292, 104
    %v895 = vpop.permute.xlu0 %894
    %v896 = vsel %vm297, %v885, 0
    %v898 = vsel %vm297, %v887, 0
    %v900 = vsel %vm297, %v889, 0
    %v902 = vsel %vm297, %v891, 0
    %v904 = vsel %vm297, %v893, 0
    %v906 = vsel %vm297, %v895, 0
    %908 = vmatprep.subr.mxu0 0.0
    %909 = vmatpush1.xpose.msra.mxu0 0.0
    %910 = vmatprep.subr.mxu0 0.0
    %911 = vmatpush1.xpose.msra.mxu0 0.0
    %912 = vmatprep.subr.mxu0 0.0
    %913 = vmatpush1.xpose.msra.mxu0 0.0
    %914 = vmatprep.subr.mxu0 0.0
    %915 = vmatpush1.xpose.msra.mxu0 0.0
    %916 = vmatprep.subr.mxu0 0.0
    %917 = vmatpush1.xpose.msra.mxu0 0.0
    %918 = vmatprep.subr.mxu0 0.0
    %919 = vmatpush1.xpose.msra.mxu0 0.0
    %920 = vmatprep.subr.mxu0 0.0
    %921 = vmatpush1.xpose.msra.mxu0 0.0
    %922 = vmatprep.subr.mxu0 0.0
    %923 = vmatpush1.xpose.msra.mxu0 0.0
    %924 = vmatprep.subr.mxu0 0.0
    %925 = vmatpush1.xpose.msra.mxu0 0.0
    %926 = vmatprep.subr.mxu0 0.0
    %927 = vmatpush1.xpose.msra.mxu0 0.0
    %928 = vmatprep.subr.mxu0 0.0
    %929 = vmatpush1.xpose.msra.mxu0 0.0
    %930 = vmatprep.subr.mxu0 0.0
    %931 = vmatpush1.xpose.msra.mxu0 0.0
    %932 = vmatprep.subr.mxu0 0.0
    %933 = vmatpush1.xpose.msra.mxu0 %v906
    %934 = vmatprep.subr.mxu0 0.0
    %935 = vmatpush1.xpose.msra.mxu0 %v904
    %936 = vmatprep.subr.mxu0 0.0
    %937 = vmatpush1.xpose.msra.mxu0 %v902
    %938 = vmatprep.subr.mxu0 0.0
    %939 = vmatpush1.xpose.msra.mxu0 %v900
    %940 = vmatprep.subr.mxu0 0.0
    %941 = vmatpush2.xpose.msra.mxu0 0.0
    %942 = vmatprep.subr.mxu0 0.0
    %943 = vmatpush2.xpose.msra.mxu0 0.0
    %944 = vmatprep.subr.mxu0 0.0
    %945 = vmatpush2.xpose.msra.mxu0 0.0
    %946 = vmatprep.subr.mxu0 0.0
    %947 = vmatpush2.xpose.msra.mxu0 0.0
    %948 = vmatprep.subr.mxu0 0.0
    %949 = vmatpush2.xpose.msra.mxu0 0.0
    %950 = vmatprep.subr.mxu0 0.0
    %951 = vmatpush2.xpose.msra.mxu0 0.0
    %952 = vmatprep.subr.mxu0 0.0
    %953 = vmatpush2.xpose.msra.mxu0 0.0
    %954 = vmatprep.subr.mxu0 0.0
    %955 = vmatpush2.xpose.msra.mxu0 0.0
    %956 = vmatprep.subr.mxu0 0.0
    %957 = vmatpush2.xpose.msra.mxu0 0.0
    %958 = vmatprep.subr.mxu0 0.0
    %959 = vmatpush2.xpose.msra.mxu0 0.0
    %960 = vmatprep.subr.mxu0 0.0
    %961 = vmatpush2.xpose.msra.mxu0 0.0
    %962 = vmatprep.subr.mxu0 0.0
    %963 = vmatpush2.xpose.msra.mxu0 0.0
    %964 = vmatprep.subr.mxu0 0.0
    %965 = vmatpush2.xpose.msra.mxu0 0.0
    %966 = vmatprep.subr.mxu0 0.0
    %967 = vmatpush2.xpose.msra.mxu0 0.0
    %968 = vmatprep.subr.mxu0 0.0
    %969 = vmatpush2.xpose.msra.mxu0 0.0
    %970 = vmatprep.subr.mxu0 0.0
    %971 = vmatpush2.xpose.msra.mxu0 0.0
    %972 = vmatprep.mubr.f32.mxu0 0.0
    %973 = vmatmul.mubr.f32.gmra.mxu0 %v896
    %v974 = vpop.f32.mrf.mxu0
    %v975 = vadd.f32 0.0, %v974
    %v976 = vpop.f32.mrf.mxu0
    %977 = vmatprep.mubr.f32.mxu0 0.0
    %978 = vmatmul.mubr.f32.gmra.mxu0 %v898
    %v979 = vpop.f32.mrf.mxu0
    %v980 = vadd.f32 0.0, %v979
    %v981 = vpop.f32.mrf.mxu0
    %982 = vdwg.mxu0
    %983 = vrot.lane.b32.xlu0 %v295, 104
    %v984 = vpop.permute.xlu0 %983
    %985 = vrot.lane.b32.xlu0 %v296, 104
    %v986 = vpop.permute.xlu0 %985
    %987 = vrot.lane.b32.xlu0 %v277, 72
    %v988 = vpop.permute.xlu0 %987
    %989 = vrot.lane.b32.xlu0 %v282, 72
    %v990 = vpop.permute.xlu0 %989
    %991 = vrot.lane.b32.xlu0 %v287, 72
    %v992 = vpop.permute.xlu0 %991
    %993 = vrot.lane.b32.xlu0 %v292, 72
    %v994 = vpop.permute.xlu0 %993
    %v995 = vsel %vm297, %v984, 0
    %v997 = vsel %vm297, %v986, 0
    %v999 = vsel %vm297, %v988, 0
    %v1001 = vsel %vm297, %v990, 0
    %v1003 = vsel %vm297, %v992, 0
    %v1005 = vsel %vm297, %v994, 0
    %1007 = vmatprep.subr.mxu0 0.0
    %1008 = vmatpush1.xpose.msra.mxu0 0.0
    %1009 = vmatprep.subr.mxu0 0.0
    %1010 = vmatpush1.xpose.msra.mxu0 0.0
    %1011 = vmatprep.subr.mxu0 0.0
    %1012 = vmatpush1.xpose.msra.mxu0 0.0
    %1013 = vmatprep.subr.mxu0 0.0
    %1014 = vmatpush1.xpose.msra.mxu0 0.0
    %1015 = vmatprep.subr.mxu0 0.0
    %1016 = vmatpush1.xpose.msra.mxu0 0.0
    %1017 = vmatprep.subr.mxu0 0.0
    %1018 = vmatpush1.xpose.msra.mxu0 0.0
    %1019 = vmatprep.subr.mxu0 0.0
    %1020 = vmatpush1.xpose.msra.mxu0 0.0
    %1021 = vmatprep.subr.mxu0 0.0
    %1022 = vmatpush1.xpose.msra.mxu0 0.0
    %1023 = vmatprep.subr.mxu0 0.0
    %1024 = vmatpush1.xpose.msra.mxu0 0.0
    %1025 = vmatprep.subr.mxu0 0.0
    %1026 = vmatpush1.xpose.msra.mxu0 0.0
    %1027 = vmatprep.subr.mxu0 0.0
    %1028 = vmatpush1.xpose.msra.mxu0 0.0
    %1029 = vmatprep.subr.mxu0 0.0
    %1030 = vmatpush1.xpose.msra.mxu0 0.0
    %1031 = vmatprep.subr.mxu0 0.0
    %1032 = vmatpush1.xpose.msra.mxu0 %v1005
    %1033 = vmatprep.subr.mxu0 0.0
    %1034 = vmatpush1.xpose.msra.mxu0 %v1003
    %1035 = vmatprep.subr.mxu0 0.0
    %1036 = vmatpush1.xpose.msra.mxu0 %v1001
    %1037 = vmatprep.subr.mxu0 0.0
    %1038 = vmatpush1.xpose.msra.mxu0 %v999
    %1039 = vmatprep.subr.mxu0 0.0
    %1040 = vmatpush2.xpose.msra.mxu0 0.0
    %1041 = vmatprep.subr.mxu0 0.0
    %1042 = vmatpush2.xpose.msra.mxu0 0.0
    %1043 = vmatprep.subr.mxu0 0.0
    %1044 = vmatpush2.xpose.msra.mxu0 0.0
    %1045 = vmatprep.subr.mxu0 0.0
    %1046 = vmatpush2.xpose.msra.mxu0 0.0
    %1047 = vmatprep.subr.mxu0 0.0
    %1048 = vmatpush2.xpose.msra.mxu0 0.0
    %1049 = vmatprep.subr.mxu0 0.0
    %1050 = vmatpush2.xpose.msra.mxu0 0.0
    %1051 = vmatprep.subr.mxu0 0.0
    %1052 = vmatpush2.xpose.msra.mxu0 0.0
    %1053 = vmatprep.subr.mxu0 0.0
    %1054 = vmatpush2.xpose.msra.mxu0 0.0
    %1055 = vmatprep.subr.mxu0 0.0
    %1056 = vmatpush2.xpose.msra.mxu0 0.0
    %1057 = vmatprep.subr.mxu0 0.0
    %1058 = vmatpush2.xpose.msra.mxu0 0.0
    %1059 = vmatprep.subr.mxu0 0.0
    %1060 = vmatpush2.xpose.msra.mxu0 0.0
    %1061 = vmatprep.subr.mxu0 0.0
    %1062 = vmatpush2.xpose.msra.mxu0 0.0
    %1063 = vmatprep.subr.mxu0 0.0
    %1064 = vmatpush2.xpose.msra.mxu0 0.0
    %1065 = vmatprep.subr.mxu0 0.0
    %1066 = vmatpush2.xpose.msra.mxu0 0.0
    %1067 = vmatprep.subr.mxu0 0.0
    %1068 = vmatpush2.xpose.msra.mxu0 0.0
    %1069 = vmatprep.subr.mxu0 0.0
    %1070 = vmatpush2.xpose.msra.mxu0 0.0
    %1071 = vmatprep.mubr.f32.mxu0 0.0
    %1072 = vmatmul.mubr.f32.gmra.mxu0 %v995
    %v1073 = vpop.f32.mrf.mxu0
    %v1074 = vadd.f32 0.0, %v1073
    %v1075 = vpop.f32.mrf.mxu0
    %1076 = vmatprep.mubr.f32.mxu0 0.0
    %1077 = vmatmul.mubr.f32.gmra.mxu0 %v997
    %v1078 = vpop.f32.mrf.mxu0
    %v1079 = vadd.f32 0.0, %v1078
    %v1080 = vpop.f32.mrf.mxu0
    %1081 = vdwg.mxu0
    %v1082 = vlaneseq
    %v1083 = vand.u32 %v1082, 127
    %s1084 = sld [smem:[#allocation2]]
    %v1085 = vstv %s1084
    %vm1086 = vcmp.ge.s32.totalorder %v1083, %v1085
    %v1087 = vsel %vm1086, -1e+30, 0.0
    %v1088 = vadd.f32 %v383, %v1087
    %v1089 = vadd.f32 %v388, %v1087
    %v1090 = vsel %vm59, %v1088, -inf
    %1091 = vmax.xlane.f32.xlu0 %v1090
    %v1092 = vpop.xlane.xlu0 %1091
    %v1093 = vsel %vm59, %v1089, -inf
    %1094 = vmax.xlane.f32.xlu0 %v1093
    %v1095 = vpop.xlane.xlu0 %1094
    %v1096 = vsub.f32 %v1088, %v1092
    %v1097 = vsub.f32 %v1089, %v1095
    %v1098 = vmul.f32 %v1096, 1.442695
    %v1099 = vpow.pop %v1098
    %v1100 = vmul.f32 %v1097, 1.442695
    %v1101 = vpow.pop %v1100
    %v1102 = vsel %vm59, %v1099, 0.0
    %1103 = vadd.xlane.f32.xlu0 %v1102
    %v1104 = vpop.xlane.xlu0 %1103
    %v1105 = vsel %vm59, %v1101, 0.0
    %1106 = vadd.xlane.f32.xlu0 %v1105
    %v1107 = vpop.xlane.xlu0 %1106
    %v1108 = vrcp.pop %v1104
    %v1109 = vrcp.pop %v1107
    %v1110 = vmul.f32 %v1099, %v1108
    %v1111 = vmul.f32 %v1101, %v1109
    %v1112 = vmul.f32 %v1110, %v480
    %v1113 = vmul.f32 %v1111, %v485
    %v1114 = vadd.f32 %v1112, 0.0
    %v1115 = vadd.f32 %v1113, 0.0
    %v1116 = vadd.f32 %v579, %v1087
    %v1117 = vadd.f32 %v584, %v1087
    %v1118 = vsel %vm59, %v1116, -inf
    %1119 = vmax.xlane.f32.xlu0 %v1118
    %v1120 = vpop.xlane.xlu0 %1119
    %v1121 = vsel %vm59, %v1117, -inf
    %1122 = vmax.xlane.f32.xlu0 %v1121
    %v1123 = vpop.xlane.xlu0 %1122
    %v1124 = vsub.f32 %v1116, %v1120
    %v1125 = vsub.f32 %v1117, %v1123
    %v1126 = vmul.f32 %v1124, 1.442695
    %v1127 = vpow.pop %v1126
    %v1128 = vmul.f32 %v1125, 1.442695
    %v1129 = vpow.pop %v1128
    %v1130 = vsel %vm59, %v1127, 0.0
    %1131 = vadd.xlane.f32.xlu0 %v1130
    %v1132 = vpop.xlane.xlu0 %1131
    %v1133 = vsel %vm59, %v1129, 0.0
    %1134 = vadd.xlane.f32.xlu0 %v1133
    %v1135 = vpop.xlane.xlu0 %1134
    %v1136 = vrcp.pop %v1132
    %v1137 = vrcp.pop %v1135
    %v1138 = vmul.f32 %v1127, %v1136
    %v1139 = vmul.f32 %v1129, %v1137
    %v1140 = vmul.f32 %v1138, %v678
    %v1141 = vmul.f32 %v1139, %v683
    %v1142 = vadd.f32 %v1114, %v1140
    %v1143 = vadd.f32 %v1115, %v1141
    %v1144 = vadd.f32 %v777, %v1087
    %v1145 = vadd.f32 %v782, %v1087
    %v1146 = vsel %vm59, %v1144, -inf
    %1147 = vmax.xlane.f32.xlu0 %v1146
    %v1148 = vpop.xlane.xlu0 %1147
    %v1149 = vsel %vm59, %v1145, -inf
    %1150 = vmax.xlane.f32.xlu0 %v1149
    %v1151 = vpop.xlane.xlu0 %1150
    %v1152 = vsub.f32 %v1144, %v1148
    %v1153 = vsub.f32 %v1145, %v1151
    %v1154 = vmul.f32 %v1152, 1.442695
    %v1155 = vpow.pop %v1154
    %v1156 = vmul.f32 %v1153, 1.442695
    %v1157 = vpow.pop %v1156
    %v1158 = vsel %vm59, %v1155, 0.0
    %1159 = vadd.xlane.f32.xlu0 %v1158
    %v1160 = vpop.xlane.xlu0 %1159
    %v1161 = vsel %vm59, %v1157, 0.0
    %1162 = vadd.xlane.f32.xlu0 %v1161
    %v1163 = vpop.xlane.xlu0 %1162
    %v1164 = vrcp.pop %v1160
    %v1165 = vrcp.pop %v1163
    %v1166 = vmul.f32 %v1155, %v1164
    %v1167 = vmul.f32 %v1157, %v1165
    %v1168 = vmul.f32 %v1166, %v876
    %v1169 = vmul.f32 %v1167, %v881
    %v1170 = vadd.f32 %v1142, %v1168
    %v1171 = vadd.f32 %v1143, %v1169
    %v1172 = vadd.f32 %v975, %v1087
    %v1173 = vadd.f32 %v980, %v1087
    %v1174 = vsel %vm59, %v1172, -inf
    %1175 = vmax.xlane.f32.xlu0 %v1174
    %v1176 = vpop.xlane.xlu0 %1175
    %v1177 = vsel %vm59, %v1173, -inf
    %1178 = vmax.xlane.f32.xlu0 %v1177
    %v1179 = vpop.xlane.xlu0 %1178
    %v1180 = vsub.f32 %v1172, %v1176
    %v1181 = vsub.f32 %v1173, %v1179
    %v1182 = vmul.f32 %v1180, 1.442695
    %v1183 = vpow.pop %v1182
    %v1184 = vmul.f32 %v1181, 1.442695
    %v1185 = vpow.pop %v1184
    %v1186 = vsel %vm59, %v1183, 0.0
    %1187 = vadd.xlane.f32.xlu0 %v1186
    %v1188 = vpop.xlane.xlu0 %1187
    %v1189 = vsel %vm59, %v1185, 0.0
    %1190 = vadd.xlane.f32.xlu0 %v1189
    %v1191 = vpop.xlane.xlu0 %1190
    %v1192 = vrcp.pop %v1188
    %v1193 = vrcp.pop %v1191
    %v1194 = vmul.f32 %v1183, %v1192
    %v1195 = vmul.f32 %v1185, %v1193
    %v1196 = vmul.f32 %v1194, %v1074
    %v1197 = vmul.f32 %v1195, %v1079
    %v1198 = vadd.f32 %v1170, %v1196
    %v1199 = vadd.f32 %v1171, %v1197
    %v1200 = vsel %vm59, %v1198, 0.0
    %1201 = vadd.xlane.f32.xlu0 %v1200
    %v1202 = vpop.xlane.xlu0 %1201
    %v1203 = vsel %vm59, %v1199, 0.0
    %1204 = vadd.xlane.f32.xlu0 %v1203
    %v1205 = vpop.xlane.xlu0 %1204
    %s1206 = sld [smem:[#allocation2 + $0x1]]
    %v1207 = vstv %s1206
    %vm1208 = vcmp.ge.s32.totalorder %v1083, %v1207
    %v1209 = vsel %vm1208, -1e+30, 0.0
    %v1210 = vadd.f32 %v383, %v1209
    %v1211 = vadd.f32 %v388, %v1209
    %v1212 = vsel %vm59, %v1210, -inf
    %1213 = vmax.xlane.f32.xlu0 %v1212
    %v1214 = vpop.xlane.xlu0 %1213
    %v1215 = vsel %vm59, %v1211, -inf
    %1216 = vmax.xlane.f32.xlu0 %v1215
    %v1217 = vpop.xlane.xlu0 %1216
    %v1218 = vsub.f32 %v1210, %v1214
    %v1219 = vsub.f32 %v1211, %v1217
    %v1220 = vmul.f32 %v1218, 1.442695
    %v1221 = vpow.pop %v1220
    %v1222 = vmul.f32 %v1219, 1.442695
    %v1223 = vpow.pop %v1222
    %v1224 = vsel %vm59, %v1221, 0.0
    %1225 = vadd.xlane.f32.xlu0 %v1224
    %v1226 = vpop.xlane.xlu0 %1225
    %v1227 = vsel %vm59, %v1223, 0.0
    %1228 = vadd.xlane.f32.xlu0 %v1227
    %v1229 = vpop.xlane.xlu0 %1228
    %v1230 = vrcp.pop %v1226
    %v1231 = vrcp.pop %v1229
    %v1232 = vmul.f32 %v1221, %v1230
    %v1233 = vmul.f32 %v1223, %v1231
    %v1234 = vmul.f32 %v1232, %v480
    %v1235 = vmul.f32 %v1233, %v485
    %v1236 = vadd.f32 %v1234, 0.0
    %v1237 = vadd.f32 %v1235, 0.0
    %v1238 = vadd.f32 %v579, %v1209
    %v1239 = vadd.f32 %v584, %v1209
    %v1240 = vsel %vm59, %v1238, -inf
    %1241 = vmax.xlane.f32.xlu0 %v1240
    %v1242 = vpop.xlane.xlu0 %1241
    %v1243 = vsel %vm59, %v1239, -inf
    %1244 = vmax.xlane.f32.xlu0 %v1243
    %v1245 = vpop.xlane.xlu0 %1244
    %v1246 = vsub.f32 %v1238, %v1242
    %v1247 = vsub.f32 %v1239, %v1245
    %v1248 = vmul.f32 %v1246, 1.442695
    %v1249 = vpow.pop %v1248
    %v1250 = vmul.f32 %v1247, 1.442695
    %v1251 = vpow.pop %v1250
    %v1252 = vsel %vm59, %v1249, 0.0
    %1253 = vadd.xlane.f32.xlu0 %v1252
    %v1254 = vpop.xlane.xlu0 %1253
    %v1255 = vsel %vm59, %v1251, 0.0
    %1256 = vadd.xlane.f32.xlu0 %v1255
    %v1257 = vpop.xlane.xlu0 %1256
    %v1258 = vrcp.pop %v1254
    %v1259 = vrcp.pop %v1257
    %v1260 = vmul.f32 %v1249, %v1258
    %v1261 = vmul.f32 %v1251, %v1259
    %v1262 = vmul.f32 %v1260, %v678
    %v1263 = vmul.f32 %v1261, %v683
    %v1264 = vadd.f32 %v1236, %v1262
    %v1265 = vadd.f32 %v1237, %v1263
    %v1266 = vadd.f32 %v777, %v1209
    %v1267 = vadd.f32 %v782, %v1209
    %v1268 = vsel %vm59, %v1266, -inf
    %1269 = vmax.xlane.f32.xlu0 %v1268
    %v1270 = vpop.xlane.xlu0 %1269
    %v1271 = vsel %vm59, %v1267, -inf
    %1272 = vmax.xlane.f32.xlu0 %v1271
    %v1273 = vpop.xlane.xlu0 %1272
    %v1274 = vsub.f32 %v1266, %v1270
    %v1275 = vsub.f32 %v1267, %v1273
    %v1276 = vmul.f32 %v1274, 1.442695
    %v1277 = vpow.pop %v1276
    %v1278 = vmul.f32 %v1275, 1.442695
    %v1279 = vpow.pop %v1278
    %v1280 = vsel %vm59, %v1277, 0.0
    %1281 = vadd.xlane.f32.xlu0 %v1280
    %v1282 = vpop.xlane.xlu0 %1281
    %v1283 = vsel %vm59, %v1279, 0.0
    %1284 = vadd.xlane.f32.xlu0 %v1283
    %v1285 = vpop.xlane.xlu0 %1284
    %v1286 = vrcp.pop %v1282
    %v1287 = vrcp.pop %v1285
    %v1288 = vmul.f32 %v1277, %v1286
    %v1289 = vmul.f32 %v1279, %v1287
    %v1290 = vmul.f32 %v1288, %v876
    %v1291 = vmul.f32 %v1289, %v881
    %v1292 = vadd.f32 %v1264, %v1290
    %v1293 = vadd.f32 %v1265, %v1291
    %v1294 = vadd.f32 %v975, %v1209
    %v1295 = vadd.f32 %v980, %v1209
    %v1296 = vsel %vm59, %v1294, -inf
    %1297 = vmax.xlane.f32.xlu0 %v1296
    %v1298 = vpop.xlane.xlu0 %1297
    %v1299 = vsel %vm59, %v1295, -inf
    %1300 = vmax.xlane.f32.xlu0 %v1299
    %v1301 = vpop.xlane.xlu0 %1300
    %v1302 = vsub.f32 %v1294, %v1298
    %v1303 = vsub.f32 %v1295, %v1301
    %v1304 = vmul.f32 %v1302, 1.442695
    %v1305 = vpow.pop %v1304
    %v1306 = vmul.f32 %v1303, 1.442695
    %v1307 = vpow.pop %v1306
    %v1308 = vsel %vm59, %v1305, 0.0
    %1309 = vadd.xlane.f32.xlu0 %v1308
    %v1310 = vpop.xlane.xlu0 %1309
    %v1311 = vsel %vm59, %v1307, 0.0
    %1312 = vadd.xlane.f32.xlu0 %v1311
    %v1313 = vpop.xlane.xlu0 %1312
    %v1314 = vrcp.pop %v1310
    %v1315 = vrcp.pop %v1313
    %v1316 = vmul.f32 %v1305, %v1314
    %v1317 = vmul.f32 %v1307, %v1315
    %v1318 = vmul.f32 %v1316, %v1074
    %v1319 = vmul.f32 %v1317, %v1079
    %v1320 = vadd.f32 %v1292, %v1318
    %v1321 = vadd.f32 %v1293, %v1319
    %v1322 = vsel %vm59, %v1320, 0.0
    %1323 = vadd.xlane.f32.xlu0 %v1322
    %v1324 = vpop.xlane.xlu0 %1323
    %v1325 = vsel %vm59, %v1321, 0.0
    %1326 = vadd.xlane.f32.xlu0 %v1325
    %v1327 = vpop.xlane.xlu0 %1326
    %v1330 = vlaneseq
    %v1331 = vshrl.u32 %v1330, 7
    %v1332 = vsub.s32 %v1083, %v1331
    %v1333 = vrot.slane %v1202, %v1332
    %v1334 = vadd.s32 %v1083, 4294967288
    %v1335 = vlaneseq
    %v1336 = vshrl.u32 %v1335, 7
    %v1337 = vsub.s32 %v1334, %v1336
    %v1338 = vrot.slane %v1205, %v1337
    %vm1339 = vcmask 130112
    %v1340 = vsel %vm1339, %v1338, %v1333
    %v1344 = vlaneseq
    %v1345 = vshrl.u32 %v1344, 7
    %v1346 = vsub.s32 %v1083, %v1345
    %v1347 = vrot.slane %v1324, %v1346
    %v1348 = vlaneseq
    %v1349 = vshrl.u32 %v1348, 7
    %v1350 = vsub.s32 %v1334, %v1349
    %v1351 = vrot.slane %v1327, %v1350
    %v1352 = vsel %vm1339, %v1351, %v1347
    %vm1354 = vcmask 1040384
    %v1355 = vsel %vm1354, %v1340, %v1352
    %v1356 = vld [vmem:[%s7] sm:$0x1]
    %v1358 = vlaneseq
    %v1359 = vshrl.u32 %v1358, 7
    %v1360 = vsub.s32 0, %v1359
    %v1361 = vrot.slane %v1356, %v1360
    %v1363 = vadd.f32 %v1355, %v1361
    %vm1364 = vcmask 123904
    %1365 = vst.msk [vmem:[#allocation5] sm:$0x3] %vm1364, %v1363
    // Predicated region
    $region42: #{tpu_custom_call.1} parent=1 // pred_check
      _
    $region43: #{tpu_custom_call.1} parent=1 // pred_check_branch
      %1367 = sbr.rel (0) target = $region45
    $region44: #{tpu_custom_call.1} parent=1 // pred_region
      %s1369 = ssub.s32 32, 32
      %1370 = vsyncadd [#allocation3], %s1369
      %s1372 = sshll.u32 [#allocation5], 4
      %s1373 = int_to_ptr.vmem [resolvable:$true] %s1372
      %1375 = dma.vmem_to_hbm [thread:$0]  %s1373, 32, %s9, [#allocation3]
    $region45: #{tpu_custom_call.1} parent=1 // pred_fallthru
      _
    // Predicated region
    $region46: #{tpu_custom_call.1} parent=1 // pred_check
      _
    $region47: #{tpu_custom_call.1} parent=1 // pred_check_branch
      %1377 = sbr.rel (0) target = $region49
    $region48: #{tpu_custom_call.1} parent=1 // pred_region
      %1378 = dma.done [#allocation3], 32
    $region49: #{tpu_custom_call.1} parent=1 // pred_fallthru
      _
    %1379 = vsyncpa [#allocation3], 1
    %1380 = vsyncpa [#allocation4], 1

</llo_original>
